<compile_context>
chip_gen: v7x
topology: tpu7x:2x2x1
jax: 0.10.0
libtpu: 0.0.40
codegen_flags: <defaults>
</compile_context>

<pallas_src>
from functools import partial

import jax
import jax.numpy as jnp
from jax import lax
from jax.experimental import pallas as pl
from jax.experimental.pallas import tpu as pltpu

TEMPORAL_WIDTH = 4  # Conv1D temporal width used by RecurrentBlock


def _gelu_tanh(x):
    # Matches recurrentgemma's gelu (torch F.gelu(approximate="tanh") / jax.nn.gelu)
    c = 0.7978845608028654  # sqrt(2/pi)
    return 0.5 * x * (1.0 + jnp.tanh(c * (x + 0.044715 * x * x * x)))


def _griffin_kernel(x_ref, wx_t_ref, bx_ref, wy_t_ref, by_ref,
                    wc_ref, bc_ref, wg_ref, bg_ref, ap_ref,
                    wo_t_ref, bo_ref,
                    out_ref, traj_ref,
                    h_sc, x1e_sc, a_sc, nx_sc):
    TC, BB, D = x_ref.shape          # time-chunk, batch-block, input width
    H = wo_t_ref.shape[0]            # lru width
    Hs = wg_ref.shape[1] - H         # lane-aligned offset of the a-gate columns
    TW = TEMPORAL_WIDTH
    M = TC * BB
    chunk = pl.program_id(1)

    # ---- start of a new sequence (first time chunk of this batch block):
    #      zero the conv history and the hidden-state carry.
    @pl.when(chunk == 0)
    def _():
        h_sc[...] = jnp.zeros_like(h_sc)
        x1e_sc[0:TW - 1] = jnp.zeros((TW - 1, BB, H), jnp.float32)

    # Time-major row slab (row r = t*BB + b); bf16 cast happens in-kernel so the
    # f32 input is only read from HBM once (no wrapper-side cast pass).
    xb = x_ref[...].reshape(M, D).astype(jnp.bfloat16)

    # ---- recurrent-branch input projection: x1 = x @ Wx^T + bx    (f32)
    x1 = jnp.dot(xb, wx_t_ref[...], preferred_element_type=jnp.float32) + bx_ref[...]

    # ---- causal depthwise temporal conv (width 4, zero history) via the
    #      persistent [history | current] window buffer; no concatenates.
    x1e_sc[TW - 1:TW - 1 + TC] = x1.reshape(TC, BB, H)
    x2 = x1 * wc_ref[TW - 1:TW, :] + bc_ref[...]
    for k in range(TW - 1):
        x2 = x2 + x1e_sc[k:k + TC].reshape(M, H) * wc_ref[k:k + 1, :]

    # ---- RG-LRU gates: one fused [Wi | Wa] matmul (single MXU pass over x2).
    g = (jnp.dot(x2.astype(jnp.bfloat16), wg_ref[...],
                 preferred_element_type=jnp.float32) + bg_ref[...])
    gate_x = jax.nn.sigmoid(g[:, :H])
    gate_a = jax.nn.sigmoid(g[:, Hs:Hs + H])
    log_a = -8.0 * gate_a * jax.nn.softplus(ap_ref[...])
    a = jnp.exp(log_a)
    # sqrt(1 - exp(2*log_a)) == sqrt(1 - a^2); clamp against rounding, reuse `a`.
    mult = jnp.sqrt(jnp.maximum(1.0 - a * a, 0.0))
    gated = x2 * gate_x

    a_sc[...] = a.reshape(TC, BB, H)
    nx_sc[...] = (gated * mult).reshape(TC, BB, H)

    # reset at global t == 0 (segment_pos == 0): a -> 0, multiplier -> 1
    @pl.when(chunk == 0)
    def _():
        a_sc[0] = jnp.zeros((BB, H), jnp.float32)
        nx_sc[0] = gated[0:BB, :]

    # ---- linear recurrence over this chunk; h carried across chunks in VMEM,
    #      trajectory written straight into the output block (no traj scratch).
    def step(t, h):
        h = a_sc[t] * h + nx_sc[t]
        traj_ref[t] = h
        return h

    h = lax.fori_loop(0, TC, step, h_sc[...], unroll=min(8, TC))
    h_sc[...] = h

    # conv history for the next chunk = last TW-1 timesteps of this chunk's x1.
    @pl.when(chunk + 1 < pl.num_programs(1))
    def _():
        x1e_sc[0:TW - 1] = x1e_sc[TC:TC + TW - 1]

    # ---- gating branch (deferred past the scan to shorten its live range)
    y = _gelu_tanh(jnp.dot(xb, wy_t_ref[...],
                           preferred_element_type=jnp.float32) + by_ref[...])

    # ---- output projection: out = (h_traj * y) @ Wo^T + bo
    traj = traj_ref[...].reshape(M, H)
    out2d = (jnp.dot((traj * y).astype(jnp.bfloat16), wo_t_ref[...],
                     preferred_element_type=jnp.float32) + bo_ref[...])
    out_ref[...] = out2d.reshape(TC, BB, D)


def _full_spec(shape):
    zeros = (0,) * len(shape)
    return pl.BlockSpec(shape, lambda b, c, _z=zeros: _z)


def _vmem_capacity_bytes():
    try:
        info = pltpu.get_tpu_info()
        cap = getattr(info, "vmem_capacity_bytes", None)
        if cap:
            return int(cap)
    except Exception:
        pass
    return 128 * 1024 * 1024


def _pick_blocks(Bp, T, D, H, vmem_limit, target_rows, want_two_blocks):
    """Choose (batch_block, time_chunk): batch_block is an 8-multiple divisor of
    the (padded) batch, time_chunk divides T and is >= TEMPORAL_WIDTH-1 when
    there is more than one chunk. Rows per grid step (bb*tc) is capped by both
    the MXU-efficiency target and a VMEM budget estimate."""
    per_row_bytes = 4 * (14 * H + 4 * D)               # scratches + blocks + temps
    weight_bytes = 2 * 2 * (3 * D * H + 2 * H * H)     # bf16 weights, 2x buffered
    budget = max(vmem_limit // 2 - weight_bytes, 8 * per_row_bytes)
    rows = int(min(target_rows, budget // per_row_bytes))

    bb_opts = [d for d in range(8, Bp + 1, 8) if Bp % d == 0]
    if want_two_blocks:  # keep >=2 batch blocks so megacore can shard them
        bb_opts = [d for d in bb_opts if Bp // d >= 2] or bb_opts
    fit = [d for d in bb_opts if d <= rows]
    bb = max(fit) if fit else min(bb_opts)

    tc_opts = [d for d in range(1, T + 1)
               if T % d == 0 and (d == T or d >= TEMPORAL_WIDTH - 1)]
    fit = [d for d in tc_opts if d * bb <= max(rows, bb)]
    tc = max(fit) if fit else min(tc_opts)
    return bb, tc


def make_params(key, input_size, hidden_size):
    """Deterministic synthetic parameters matching the module's shapes."""
    D, H = input_size, hidden_size
    ks = jax.random.split(key, 12)

    def w(k, shape, scale):
        return (scale * jax.random.normal(k, shape)).astype(jnp.float32)

    params = dict(
        wy=w(ks[0], (H, D), 1.0 / float(D) ** 0.5),   # linear_y.weight (out, in)
        by=w(ks[1], (1, H), 0.02),
        wx=w(ks[2], (H, D), 1.0 / float(D) ** 0.5),   # linear_x.weight
        bx=w(ks[3], (1, H), 0.02),
        wc=w(ks[4], (TEMPORAL_WIDTH, H), 0.3),        # Conv1D.w
        bc=w(ks[5], (1, H), 0.02),                    # Conv1D.b
        wi=w(ks[6], (H, H), 1.0 / float(H) ** 0.5),   # rg_lru.input_gate (1 head)
        bi=w(ks[7], (1, H), 0.02),
        wa=w(ks[8], (H, H), 1.0 / float(H) ** 0.5),   # rg_lru.a_gate
        ba=w(ks[9], (1, H), 0.02),
        wo=w(ks[10], (D, H), 1.0 / float(H) ** 0.5),  # linear_out.weight
        bo=w(ks[11], (1, D), 0.02),
    )
    # a_param init following rnn_param_init(min_rad=0.9, max_rad=0.999, "softplus")
    u = jnp.linspace(0.9 ** 2 + 1e-8, 0.999 ** 2 + 1e-8, H, dtype=jnp.float32)
    params["a_param"] = jnp.log(jnp.exp(-0.5 * jnp.log(u)) - 1.0)[None, :]
    return params


def prepare_params(params):
    """One-time weight prep (transpose / bf16 cast / gate-weight fusion), kept
    outside the jitted call path so it is not re-done per forward call."""
    bf16 = jnp.bfloat16
    H = params["wi"].shape[0]
    Hs = -(-H // 128) * 128            # lane-aligned slot offset for the a-gate
    wg = jnp.zeros((H, Hs + H), jnp.float32)
    wg = wg.at[:, :H].set(params["wi"]).at[:, Hs:Hs + H].set(params["wa"])
    bg = jnp.zeros((1, Hs + H), jnp.float32)
    bg = bg.at[:, :H].set(params["bi"]).at[:, Hs:Hs + H].set(params["ba"])
    return dict(
        wx_t=params["wx"].T.astype(bf16), bx=params["bx"],
        wy_t=params["wy"].T.astype(bf16), by=params["by"],
        wc=params["wc"], bc=params["bc"],
        wg=wg.astype(bf16), bg=bg,
        a_param=params["a_param"],
        wo_t=params["wo"].T.astype(bf16), bo=params["bo"],
    )


@partial(jax.jit, static_argnames=("bb", "tc"))
def griffin_recurrent_block(x_tbd, prep, *, bb=None, tc=None):
    """x_tbd: (seq, batch, input_size) — PyTorch-RNN layout (batch_first=False).
    prep: prepare_params(params).
    Returns ((out (T,B,D), traj (B,T,H)), hn (B,H)) — the wrapper's forward with
    hx=None."""
    # TODO(synk): hx != None (warm rg_lru / conv1d state) path not implemented.
    T, B, D = x_tbd.shape
    H = prep["wo_t"].shape[0]
    Hg = prep["wg"].shape[1]

    # Pad the batch to a multiple of 8 so every block is (8,128)-tileable and the
    # batch block never has to fall back to the whole (possibly huge) batch.
    Bp = -(-B // 8) * 8
    if Bp != B:
        x_tbd = jnp.pad(x_tbd, ((0, 0), (0, Bp - B), (0, 0)))

    # Generation-aware VMEM budget / block-size targets.
    cap = _vmem_capacity_bytes()
    if cap <= 64 * 1024 * 1024:                 # v7x-class: 64 MiB/TC, 2 TCs/chip
        vmem_limit = (cap * 3) // 4             # leave Mosaic headroom
        target_rows, want_two_blocks = 256, True
    else:                                       # v5e / v6e: 128 MiB/TC
        vmem_limit = min((cap * 4) // 5, 112 * 1024 * 1024)
        target_rows, want_two_blocks = 512, False

    bb_a, tc_a = _pick_blocks(Bp, T, D, H, vmem_limit, target_rows, want_two_blocks)
    BB = bb if bb is not None else bb_a
    TC = tc if tc is not None else tc_a
    assert Bp % BB == 0 and BB % 8 == 0, (Bp, BB)
    assert T % TC == 0 and (TC == T or TC >= TEMPORAL_WIDTH - 1), (T, TC)
    grid = (Bp // BB, T // TC)

    in_specs = [
        pl.BlockSpec((TC, BB, D), lambda b, c: (c, b, 0)),     # x, time-major blocks
        _full_spec((D, H)), _full_spec((1, H)),                # Wx^T, bx
        _full_spec((D, H)), _full_spec((1, H)),                # Wy^T, by
        _full_spec((TEMPORAL_WIDTH, H)), _full_spec((1, H)),   # conv w, b
        _full_spec((H, Hg)), _full_spec((1, Hg)),              # [Wi|Wa], [bi|ba]
        _full_spec((1, H)),                                    # a_param
        _full_spec((H, D)), _full_spec((1, D)),                # Wout^T, bout
    ]
    # TODO(synk): at production widths single-buffer / stream the big weight
    # matrices (constant block index) instead of default double-buffering.
    out_specs = [
        pl.BlockSpec((TC, BB, D), lambda b, c: (c, b, 0)),     # out  (T, B, D)
        pl.BlockSpec((TC, BB, H), lambda b, c: (c, b, 0)),     # traj (T, B, H)
    ]
    out_shape = [
        jax.ShapeDtypeStruct((T, Bp, D), jnp.float32),
        jax.ShapeDtypeStruct((T, Bp, H), jnp.float32),
    ]
    scratch_shapes = [
        pltpu.VMEM((BB, H), jnp.float32),                            # h carry
        pltpu.VMEM((TC + TEMPORAL_WIDTH - 1, BB, H), jnp.float32),   # conv window
        pltpu.VMEM((TC, BB, H), jnp.float32),                        # a
        pltpu.VMEM((TC, BB, H), jnp.float32),                        # nx
    ]

    flops = 2 * Bp * T * (3 * D * H + 2 * H * H) + 2 * Bp * T * H * TEMPORAL_WIDTH
    transcendentals = 6 * Bp * T * H
    bytes_accessed = (4 * Bp * T * (2 * D + 2 * H)
                      + 2 * (3 * D * H + 2 * H * H)
                      + 4 * ((TEMPORAL_WIDTH + 6) * H + 2 * D))
    cost = pl.CostEstimate(flops=int(flops),
                           transcendentals=int(transcendentals),
                           bytes_accessed=int(bytes_accessed))

    out_tbd, traj_tbh = pl.pallas_call(
        _griffin_kernel,
        grid=grid,
        in_specs=in_specs,
        out_specs=out_specs,
        out_shape=out_shape,
        scratch_shapes=scratch_shapes,
        compiler_params=pltpu.CompilerParams(
            dimension_semantics=("parallel", "arbitrary"),
            vmem_limit_bytes=int(vmem_limit)),
        cost_estimate=cost,
    )(x_tbd,
      prep["wx_t"], prep["bx"], prep["wy_t"], prep["by"],
      prep["wc"], prep["bc"], prep["wg"], prep["bg"], prep["a_param"],
      prep["wo_t"], prep["bo"])

    out_tbd = out_tbd[:, :B]                      # drop batch padding
    traj_tbh = traj_tbh[:, :B]
    hn_bh = traj_tbh[-1]                          # last hidden state (B, H)
    traj_bth = jnp.transpose(traj_tbh, (1, 0, 2))  # (B, T, H), one HBM transpose
    return (out_tbd, traj_bth), hn_bh


def griffin_reference(x_tbd, params):
    """Pure-JAX f32 reference mirroring the PyTorch module (hx=None path)."""
    x = jnp.transpose(x_tbd, (1, 0, 2)).astype(jnp.float32)  # (B, T, D)
    B, T, _ = x.shape
    H = params["wx"].shape[0]

    y = _gelu_tanh(x @ params["wy"].T + params["by"][0])
    x1 = x @ params["wx"].T + params["bx"][0]

    x2 = jnp.broadcast_to(params["bc"][0], x1.shape)
    for k in range(TEMPORAL_WIDTH):
        shift = TEMPORAL_WIDTH - 1 - k
        if shift == 0:
            win = x1
        else:
            win = jnp.concatenate(
                [jnp.zeros((B, shift, H), jnp.float32), x1[:, :T - shift]], axis=1)
        x2 = x2 + win * params["wc"][k]

    gate_x = jax.nn.sigmoid(x2 @ params["wi"] + params["bi"][0])
    gate_a = jax.nn.sigmoid(x2 @ params["wa"] + params["ba"][0])
    log_a = -8.0 * gate_a * jax.nn.softplus(params["a_param"][0])
    a = jnp.exp(log_a)
    reset = (jnp.arange(T) == 0)[None, :, None]
    mult = jnp.where(reset, 1.0, jnp.sqrt(1.0 - jnp.exp(2.0 * log_a)))
    nx = x2 * gate_x * mult
    a_eff = jnp.where(reset, 0.0, a)

    h = jnp.zeros((B, H), jnp.float32)
    traj = []
    for t in range(T):
        h = a_eff[:, t] * h + nx[:, t]
        traj.append(h)
    traj = jnp.stack(traj, axis=1)
    out = (traj * y) @ params["wo"].T + params["bo"][0]
    return (jnp.transpose(out, (1, 0, 2)), traj), h


if __name__ == "__main__":
    key = jax.random.PRNGKey(0)
    k1, k2, kp = jax.random.split(key, 3)
    D, H = 32, 32  # input_size, hidden_size
    params = make_params(kp, D, H)
    prep = prepare_params(params)

    # --- case 1: small shapes (batch padded 2 -> 8, single time chunk)
    T1, B1 = 8, 2
    x_a = jax.random.normal(k1, (T1, B1, D), dtype=jnp.float32)   # batch_first=False
    (out_a, traj_a), hn_a = griffin_recurrent_block(x_a, prep)
    jax.block_until_ready((out_a, traj_a, hn_a))
    (out_ar, traj_ar), hn_ar = griffin_reference(x_a, params)
    assert out_a.shape == (T1, B1, D) and traj_a.shape == (B1, T1, H) and hn_a.shape == (B1, H)
    # Tolerance covers bf16 MXU operands (f32 accumulation, f32 elementwise path).
    assert jnp.allclose(out_a, out_ar, atol=5e-2, rtol=5e-2)
    assert jnp.allclose(traj_a, traj_ar, atol=5e-2, rtol=5e-2)
    assert jnp.allclose(hn_a, hn_ar, atol=5e-2, rtol=5e-2)

    # --- case 2: exercises batch padding (10 -> 16), 2 batch blocks, 3 time chunks
    T2, B2 = 12, 10
    x_b = jax.random.normal(k2, (T2, B2, D), dtype=jnp.float32)
    (out_b, traj_b), hn_b = griffin_recurrent_block(x_b, prep, bb=8, tc=4)
    jax.block_until_ready((out_b, traj_b, hn_b))
    (out_br, traj_br), hn_br = griffin_reference(x_b, params)
    assert out_b.shape == (T2, B2, D) and traj_b.shape == (B2, T2, H) and hn_b.shape == (B2, H)
    assert jnp.allclose(out_b, out_br, atol=5e-2, rtol=5e-2)
    assert jnp.allclose(traj_b, traj_br, atol=5e-2, rtol=5e-2)
    assert jnp.allclose(hn_b, hn_br, atol=5e-2, rtol=5e-2)

    print("KERNEL_OK")
</pallas_src>

<mosaic_0001>
module attributes {stable_mosaic.version = 11 : i64} {
  func.func @_griffin_kernel(%arg0: i32, %arg1: i32, %arg2: memref<8x8x32xf32, #tpu.memory_space<vmem>>, %arg3: memref<32x32xbf16, #tpu.memory_space<vmem>>, %arg4: memref<1x32xf32, #tpu.memory_space<vmem>>, %arg5: memref<32x32xbf16, #tpu.memory_space<vmem>>, %arg6: memref<1x32xf32, #tpu.memory_space<vmem>>, %arg7: memref<4x32xf32, #tpu.memory_space<vmem>>, %arg8: memref<1x32xf32, #tpu.memory_space<vmem>>, %arg9: memref<32x160xbf16, #tpu.memory_space<vmem>>, %arg10: memref<1x160xf32, #tpu.memory_space<vmem>>, %arg11: memref<1x32xf32, #tpu.memory_space<vmem>>, %arg12: memref<32x32xbf16, #tpu.memory_space<vmem>>, %arg13: memref<1x32xf32, #tpu.memory_space<vmem>>, %arg14: memref<8x8x32xf32, #tpu.memory_space<vmem>>, %arg15: memref<8x8x32xf32, #tpu.memory_space<vmem>>, %arg16: memref<8x32xf32, #tpu.memory_space<vmem>>, %arg17: memref<11x8x32xf32, #tpu.memory_space<vmem>>, %arg18: memref<8x8x32xf32, #tpu.memory_space<vmem>>, %arg19: memref<8x8x32xf32, #tpu.memory_space<vmem>>) attributes {dimension_semantics = [#tpu.dimension_semantics<parallel>, #tpu.dimension_semantics<arbitrary>], iteration_bounds = array<i64: 1, 1>, scalar_prefetch = 0 : i64, scratch_operands = 4 : i64, tpu.core_type = #tpu.core_type<tc>, window_params = [{transform_indices = @transform_0, window_bounds = array<i64: 8, 8, 32>}, {pipeline_mode = #tpu.pipeline_mode<synchronous>, transform_indices = @transform_1, window_bounds = array<i64: 32, 32>}, {pipeline_mode = #tpu.pipeline_mode<synchronous>, transform_indices = @transform_2, window_bounds = array<i64: 1, 32>}, {pipeline_mode = #tpu.pipeline_mode<synchronous>, transform_indices = @transform_3, window_bounds = array<i64: 32, 32>}, {pipeline_mode = #tpu.pipeline_mode<synchronous>, transform_indices = @transform_4, window_bounds = array<i64: 1, 32>}, {pipeline_mode = #tpu.pipeline_mode<synchronous>, transform_indices = @transform_5, window_bounds = array<i64: 4, 32>}, {pipeline_mode = #tpu.pipeline_mode<synchronous>, transform_indices = @transform_6, window_bounds = array<i64: 1, 32>}, {pipeline_mode = #tpu.pipeline_mode<synchronous>, transform_indices = @transform_7, window_bounds = array<i64: 32, 160>}, {pipeline_mode = #tpu.pipeline_mode<synchronous>, transform_indices = @transform_8, window_bounds = array<i64: 1, 160>}, {pipeline_mode = #tpu.pipeline_mode<synchronous>, transform_indices = @transform_9, window_bounds = array<i64: 1, 32>}, {pipeline_mode = #tpu.pipeline_mode<synchronous>, transform_indices = @transform_10, window_bounds = array<i64: 32, 32>}, {pipeline_mode = #tpu.pipeline_mode<synchronous>, transform_indices = @transform_11, window_bounds = array<i64: 1, 32>}, {transform_indices = @transform_12, window_bounds = array<i64: 8, 8, 32>}, {transform_indices = @transform_13, window_bounds = array<i64: 8, 8, 32>}]} {
    %c0_i32 = arith.constant 0 : i32
    %0 = arith.cmpi eq, %arg1, %c0_i32 : i32
    %1 = arith.extui %0 : i1 to i32
    %c0_i32_0 = arith.constant 0 : i32
    %2 = arith.cmpi ne, %1, %c0_i32_0 : i32
    scf.if %2 {
      %cst_124 = arith.constant 0.000000e+00 : f32
      %221 = vector.broadcast %cst_124 : f32 to vector<8x32xf32>
      %c0_125 = arith.constant 0 : index
      %c0_126 = arith.constant 0 : index
      %222 = vector.load %arg16[%c0_125, %c0_126] : memref<8x32xf32, #tpu.memory_space<vmem>>, vector<8x32xf32>
      tpu.vector_store %arg16[%c0_125, %c0_126], %221 {strides = array<i32>} : memref<8x32xf32, #tpu.memory_space<vmem>>, vector<8x32xf32>,
      %cst_127 = arith.constant 0.000000e+00 : f32
      %223 = vector.broadcast %cst_127 : f32 to vector<3x8x32xf32>
      %c0_128 = arith.constant 0 : index
      %c0_129 = arith.constant 0 : index
      %c0_130 = arith.constant 0 : index
      %224 = vector.load %arg17[%c0_128, %c0_129, %c0_130] : memref<11x8x32xf32, #tpu.memory_space<vmem>>, vector<3x8x32xf32>
      tpu.vector_store %arg17[%c0_128, %c0_129, %c0_130], %223 {strides = array<i32>} : memref<11x8x32xf32, #tpu.memory_space<vmem>>, vector<3x8x32xf32>,
    } else {
    }
    %c0 = arith.constant 0 : index
    %c0_1 = arith.constant 0 : index
    %c0_2 = arith.constant 0 : index
    %3 = vector.load %arg2[%c0, %c0_1, %c0_2] : memref<8x8x32xf32, #tpu.memory_space<vmem>>, vector<8x8x32xf32>
    %4 = vector.shape_cast %3 : vector<8x8x32xf32> to vector<64x32xf32>
    %5 = arith.truncf %4 : vector<64x32xf32> to vector<64x32xbf16>
    %c0_3 = arith.constant 0 : index
    %c0_4 = arith.constant 0 : index
    %6 = vector.load %arg3[%c0_3, %c0_4] : memref<32x32xbf16, #tpu.memory_space<vmem>>, vector<32x32xbf16>
    %cst = arith.constant dense<0.000000e+00> : vector<64x32xf32>
    %7 = tpu.matmul %5, %6, %cst {dimension_numbers = #tpu.dot_dimension_numbers<[1], [0], [0], [1], [0, 0, 1, 1], [], []>} : vector<64x32xbf16>, vector<32x32xbf16>, vector<64x32xf32> -> vector<64x32xf32>
    %c0_5 = arith.constant 0 : index
    %c0_6 = arith.constant 0 : index
    %8 = vector.load %arg4[%c0_5, %c0_6] : memref<1x32xf32, #tpu.memory_space<vmem>>, vector<1x32xf32>
    %9 = vector.broadcast %8 : vector<1x32xf32> to vector<64x32xf32>
    %10 = arith.addf %7, %9 : vector<64x32xf32>
    %11 = vector.shape_cast %10 : vector<64x32xf32> to vector<8x8x32xf32>
    %c3 = arith.constant 3 : index
    %c0_7 = arith.constant 0 : index
    %c0_8 = arith.constant 0 : index
    %12 = vector.load %arg17[%c3, %c0_7, %c0_8] : memref<11x8x32xf32, #tpu.memory_space<vmem>>, vector<8x8x32xf32>
    tpu.vector_store %arg17[%c3, %c0_7, %c0_8], %11 {strides = array<i32>} : memref<11x8x32xf32, #tpu.memory_space<vmem>>, vector<8x8x32xf32>,
    %c3_9 = arith.constant 3 : index
    %c0_10 = arith.constant 0 : index
    %13 = vector.load %arg7[%c3_9, %c0_10] : memref<4x32xf32, #tpu.memory_space<vmem>>, vector<1x32xf32>
    %14 = vector.broadcast %13 : vector<1x32xf32> to vector<64x32xf32>
    %15 = arith.mulf %10, %14 : vector<64x32xf32>
    %c0_11 = arith.constant 0 : index
    %c0_12 = arith.constant 0 : index
    %16 = vector.load %arg8[%c0_11, %c0_12] : memref<1x32xf32, #tpu.memory_space<vmem>>, vector<1x32xf32>
    %17 = vector.broadcast %16 : vector<1x32xf32> to vector<64x32xf32>
    %18 = arith.addf %15, %17 : vector<64x32xf32>
    %c0_13 = arith.constant 0 : index
    %c0_14 = arith.constant 0 : index
    %c0_15 = arith.constant 0 : index
    %19 = vector.load %arg17[%c0_13, %c0_14, %c0_15] : memref<11x8x32xf32, #tpu.memory_space<vmem>>, vector<8x8x32xf32>
    %20 = vector.shape_cast %19 : vector<8x8x32xf32> to vector<64x32xf32>
    %c0_16 = arith.constant 0 : index
    %c0_17 = arith.constant 0 : index
    %21 = vector.load %arg7[%c0_16, %c0_17] : memref<4x32xf32, #tpu.memory_space<vmem>>, vector<1x32xf32>
    %22 = vector.broadcast %21 : vector<1x32xf32> to vector<64x32xf32>
    %23 = arith.mulf %20, %22 : vector<64x32xf32>
    %24 = arith.addf %18, %23 : vector<64x32xf32>
    %c1 = arith.constant 1 : index
    %c0_18 = arith.constant 0 : index
    %c0_19 = arith.constant 0 : index
    %25 = vector.load %arg17[%c1, %c0_18, %c0_19] : memref<11x8x32xf32, #tpu.memory_space<vmem>>, vector<8x8x32xf32>
    %26 = vector.shape_cast %25 : vector<8x8x32xf32> to vector<64x32xf32>
    %c1_20 = arith.constant 1 : index
    %c0_21 = arith.constant 0 : index
    %27 = vector.load %arg7[%c1_20, %c0_21] : memref<4x32xf32, #tpu.memory_space<vmem>>, vector<1x32xf32>
    %28 = vector.broadcast %27 : vector<1x32xf32> to vector<64x32xf32>
    %29 = arith.mulf %26, %28 : vector<64x32xf32>
    %30 = arith.addf %24, %29 : vector<64x32xf32>
    %c2 = arith.constant 2 : index
    %c0_22 = arith.constant 0 : index
    %c0_23 = arith.constant 0 : index
    %31 = vector.load %arg17[%c2, %c0_22, %c0_23] : memref<11x8x32xf32, #tpu.memory_space<vmem>>, vector<8x8x32xf32>
    %32 = vector.shape_cast %31 : vector<8x8x32xf32> to vector<64x32xf32>
    %c2_24 = arith.constant 2 : index
    %c0_25 = arith.constant 0 : index
    %33 = vector.load %arg7[%c2_24, %c0_25] : memref<4x32xf32, #tpu.memory_space<vmem>>, vector<1x32xf32>
    %34 = vector.broadcast %33 : vector<1x32xf32> to vector<64x32xf32>
    %35 = arith.mulf %32, %34 : vector<64x32xf32>
    %36 = arith.addf %30, %35 : vector<64x32xf32>
    %37 = arith.truncf %36 : vector<64x32xf32> to vector<64x32xbf16>
    %c0_26 = arith.constant 0 : index
    %c0_27 = arith.constant 0 : index
    %38 = vector.load %arg9[%c0_26, %c0_27] : memref<32x160xbf16, #tpu.memory_space<vmem>>, vector<32x160xbf16>
    %cst_28 = arith.constant dense<0.000000e+00> : vector<64x160xf32>
    %39 = tpu.matmul %37, %38, %cst_28 {dimension_numbers = #tpu.dot_dimension_numbers<[1], [0], [0], [1], [0, 0, 1, 1], [], []>} : vector<64x32xbf16>, vector<32x160xbf16>, vector<64x160xf32> -> vector<64x160xf32>
    %c0_29 = arith.constant 0 : index
    %c0_30 = arith.constant 0 : index
    %40 = vector.load %arg10[%c0_29, %c0_30] : memref<1x160xf32, #tpu.memory_space<vmem>>, vector<1x160xf32>
    %41 = vector.broadcast %40 : vector<1x160xf32> to vector<64x160xf32>
    %42 = arith.addf %39, %41 : vector<64x160xf32>
    %43 = vector.extract_strided_slice %42 {offsets = [0, 0], sizes = [64, 32], strides = [1, 1]} : vector<64x160xf32> to vector<64x32xf32>
    %44 = arith.negf %43 : vector<64x32xf32>
    %45 = math.exp %44 : vector<64x32xf32>
    %cst_31 = arith.constant 1.000000e+00 : f32
    %46 = vector.broadcast %cst_31 : f32 to vector<64x32xf32>
    %47 = arith.addf %46, %45 : vector<64x32xf32>
    %48 = arith.divf %46, %47 : vector<64x32xf32>
    %49 = vector.extract_strided_slice %42 {offsets = [0, 128], sizes = [64, 32], strides = [1, 1]} : vector<64x160xf32> to vector<64x32xf32>
    %50 = arith.negf %49 : vector<64x32xf32>
    %51 = math.exp %50 : vector<64x32xf32>
    %cst_32 = arith.constant 1.000000e+00 : f32
    %52 = vector.broadcast %cst_32 : f32 to vector<64x32xf32>
    %53 = arith.addf %52, %51 : vector<64x32xf32>
    %54 = arith.divf %52, %53 : vector<64x32xf32>
    %cst_33 = arith.constant -8.000000e+00 : f32
    %55 = vector.broadcast %cst_33 : f32 to vector<64x32xf32>
    %56 = arith.mulf %55, %54 : vector<64x32xf32>
    %c0_34 = arith.constant 0 : index
    %c0_35 = arith.constant 0 : index
    %57 = vector.load %arg11[%c0_34, %c0_35] : memref<1x32xf32, #tpu.memory_space<vmem>>, vector<1x32xf32>
    %cst_36 = arith.constant 0.000000e+00 : f32
    %58 = vector.broadcast %cst_36 : f32 to vector<1x32xf32>
    %59 = arith.maximumf %57, %58 : vector<1x32xf32>
    %60 = vector.broadcast %cst_36 : f32 to vector<1x32xf32>
    %61 = arith.subf %57, %60 : vector<1x32xf32>
    %62 = arith.cmpf one, %61, %61 : vector<1x32xf32>
    %63 = vector.broadcast %cst_36 : f32 to vector<1x32xf32>
    %64 = arith.addf %57, %63 : vector<1x32xf32>
    %65 = math.absf %61 : vector<1x32xf32>
    %cst_37 = arith.constant 0.000000e+00 : f32
    %66 = vector.broadcast %cst_37 : f32 to vector<1x32xf32>
    %67 = arith.subf %66, %65 : vector<1x32xf32>
    %68 = math.exp %67 : vector<1x32xf32>
    %69 = math.log1p %68 : vector<1x32xf32>
    %70 = arith.addf %59, %69 : vector<1x32xf32>
    %71 = arith.select %62, %64, %70 : vector<1x32xi1>, vector<1x32xf32>
    %72 = vector.broadcast %71 : vector<1x32xf32> to vector<64x32xf32>
    %73 = arith.mulf %56, %72 : vector<64x32xf32>
    %74 = math.exp %73 : vector<64x32xf32>
    %75 = arith.mulf %74, %74 : vector<64x32xf32>
    %cst_38 = arith.constant 1.000000e+00 : f32
    %76 = vector.broadcast %cst_38 : f32 to vector<64x32xf32>
    %77 = arith.subf %76, %75 : vector<64x32xf32>
    %cst_39 = arith.constant 0.000000e+00 : f32
    %78 = vector.broadcast %cst_39 : f32 to vector<64x32xf32>
    %79 = arith.maximumf %77, %78 : vector<64x32xf32>
    %80 = math.sqrt %79 : vector<64x32xf32>
    %81 = arith.mulf %36, %48 : vector<64x32xf32>
    %82 = vector.shape_cast %74 : vector<64x32xf32> to vector<8x8x32xf32>
    %c0_40 = arith.constant 0 : index
    %c0_41 = arith.constant 0 : index
    %c0_42 = arith.constant 0 : index
    %83 = vector.load %arg18[%c0_40, %c0_41, %c0_42] : memref<8x8x32xf32, #tpu.memory_space<vmem>>, vector<8x8x32xf32>
    tpu.vector_store %arg18[%c0_40, %c0_41, %c0_42], %82 {strides = array<i32>} : memref<8x8x32xf32, #tpu.memory_space<vmem>>, vector<8x8x32xf32>,
    %84 = arith.mulf %81, %80 : vector<64x32xf32>
    %85 = vector.shape_cast %84 : vector<64x32xf32> to vector<8x8x32xf32>
    %c0_43 = arith.constant 0 : index
    %c0_44 = arith.constant 0 : index
    %c0_45 = arith.constant 0 : index
    %86 = vector.load %arg19[%c0_43, %c0_44, %c0_45] : memref<8x8x32xf32, #tpu.memory_space<vmem>>, vector<8x8x32xf32>
    tpu.vector_store %arg19[%c0_43, %c0_44, %c0_45], %85 {strides = array<i32>} : memref<8x8x32xf32, #tpu.memory_space<vmem>>, vector<8x8x32xf32>,
    %c0_i32_46 = arith.constant 0 : i32
    %87 = arith.cmpi eq, %arg1, %c0_i32_46 : i32
    %88 = arith.extui %87 : i1 to i32
    %c0_i32_47 = arith.constant 0 : i32
    %89 = arith.cmpi ne, %88, %c0_i32_47 : i32
    scf.if %89 {
      %cst_124 = arith.constant 0.000000e+00 : f32
      %221 = vector.broadcast %cst_124 : f32 to vector<8x32xf32>
      %c0_125 = arith.constant 0 : index
      %c0_126 = arith.constant 0 : index
      %c0_127 = arith.constant 0 : index
      %222 = vector.load %arg18[%c0_125, %c0_126, %c0_127] : memref<8x8x32xf32, #tpu.memory_space<vmem>>, vector<1x8x32xf32>
      %223 = vector.shape_cast %222 : vector<1x8x32xf32> to vector<8x32xf32>
      %224 = vector.shape_cast %221 : vector<8x32xf32> to vector<1x8x32xf32>
      tpu.vector_store %arg18[%c0_125, %c0_126, %c0_127], %224 {strides = array<i32>} : memref<8x8x32xf32, #tpu.memory_space<vmem>>, vector<1x8x32xf32>,
      %225 = vector.extract_strided_slice %81 {offsets = [0, 0], sizes = [8, 32], strides = [1, 1]} : vector<64x32xf32> to vector<8x32xf32>
      %c0_128 = arith.constant 0 : index
      %c0_129 = arith.constant 0 : index
      %c0_130 = arith.constant 0 : index
      %226 = vector.load %arg19[%c0_128, %c0_129, %c0_130] : memref<8x8x32xf32, #tpu.memory_space<vmem>>, vector<1x8x32xf32>
      %227 = vector.shape_cast %226 : vector<1x8x32xf32> to vector<8x32xf32>
      %228 = vector.shape_cast %225 : vector<8x32xf32> to vector<1x8x32xf32>
      tpu.vector_store %arg19[%c0_128, %c0_129, %c0_130], %228 {strides = array<i32>} : memref<8x8x32xf32, #tpu.memory_space<vmem>>, vector<1x8x32xf32>,
    } else {
    }
    %c0_48 = arith.constant 0 : index
    %c0_49 = arith.constant 0 : index
    %90 = vector.load %arg16[%c0_48, %c0_49] : memref<8x32xf32, #tpu.memory_space<vmem>>, vector<8x32xf32>
    %c0_i32_50 = arith.constant 0 : i32
    %91 = arith.index_cast %c0_i32_50 : i32 to index
    %c0_51 = arith.constant 0 : index
    %c0_52 = arith.constant 0 : index
    %92 = vector.load %arg18[%91, %c0_51, %c0_52] : memref<8x8x32xf32, #tpu.memory_space<vmem>>, vector<1x8x32xf32>
    %93 = vector.shape_cast %92 : vector<1x8x32xf32> to vector<8x32xf32>
    %94 = arith.mulf %93, %90 : vector<8x32xf32>
    %95 = arith.index_cast %c0_i32_50 : i32 to index
    %c0_53 = arith.constant 0 : index
    %c0_54 = arith.constant 0 : index
    %96 = vector.load %arg19[%95, %c0_53, %c0_54] : memref<8x8x32xf32, #tpu.memory_space<vmem>>, vector<1x8x32xf32>
    %97 = vector.shape_cast %96 : vector<1x8x32xf32> to vector<8x32xf32>
    %98 = arith.addf %94, %97 : vector<8x32xf32>
    %99 = arith.index_cast %c0_i32_50 : i32 to index
    %c0_55 = arith.constant 0 : index
    %c0_56 = arith.constant 0 : index
    %100 = vector.load %arg15[%99, %c0_55, %c0_56] : memref<8x8x32xf32, #tpu.memory_space<vmem>>, vector<1x8x32xf32>
    %101 = vector.shape_cast %100 : vector<1x8x32xf32> to vector<8x32xf32>
    %102 = vector.shape_cast %98 : vector<8x32xf32> to vector<1x8x32xf32>
    tpu.vector_store %arg15[%99, %c0_55, %c0_56], %102 {strides = array<i32>} : memref<8x8x32xf32, #tpu.memory_space<vmem>>, vector<1x8x32xf32>,
    %c1_i32 = arith.constant 1 : i32
    %103 = arith.index_cast %c1_i32 : i32 to index
    %c0_57 = arith.constant 0 : index
    %c0_58 = arith.constant 0 : index
    %104 = vector.load %arg18[%103, %c0_57, %c0_58] : memref<8x8x32xf32, #tpu.memory_space<vmem>>, vector<1x8x32xf32>
    %105 = vector.shape_cast %104 : vector<1x8x32xf32> to vector<8x32xf32>
    %106 = arith.mulf %105, %98 : vector<8x32xf32>
    %107 = arith.index_cast %c1_i32 : i32 to index
    %c0_59 = arith.constant 0 : index
    %c0_60 = arith.constant 0 : index
    %108 = vector.load %arg19[%107, %c0_59, %c0_60] : memref<8x8x32xf32, #tpu.memory_space<vmem>>, vector<1x8x32xf32>
    %109 = vector.shape_cast %108 : vector<1x8x32xf32> to vector<8x32xf32>
    %110 = arith.addf %106, %109 : vector<8x32xf32>
    %111 = arith.index_cast %c1_i32 : i32 to index
    %c0_61 = arith.constant 0 : index
    %c0_62 = arith.constant 0 : index
    %112 = vector.load %arg15[%111, %c0_61, %c0_62] : memref<8x8x32xf32, #tpu.memory_space<vmem>>, vector<1x8x32xf32>
    %113 = vector.shape_cast %112 : vector<1x8x32xf32> to vector<8x32xf32>
    %114 = vector.shape_cast %110 : vector<8x32xf32> to vector<1x8x32xf32>
    tpu.vector_store %arg15[%111, %c0_61, %c0_62], %114 {strides = array<i32>} : memref<8x8x32xf32, #tpu.memory_space<vmem>>, vector<1x8x32xf32>,
    %c2_i32 = arith.constant 2 : i32
    %115 = arith.index_cast %c2_i32 : i32 to index
    %c0_63 = arith.constant 0 : index
    %c0_64 = arith.constant 0 : index
    %116 = vector.load %arg18[%115, %c0_63, %c0_64] : memref<8x8x32xf32, #tpu.memory_space<vmem>>, vector<1x8x32xf32>
    %117 = vector.shape_cast %116 : vector<1x8x32xf32> to vector<8x32xf32>
    %118 = arith.mulf %117, %110 : vector<8x32xf32>
    %119 = arith.index_cast %c2_i32 : i32 to index
    %c0_65 = arith.constant 0 : index
    %c0_66 = arith.constant 0 : index
    %120 = vector.load %arg19[%119, %c0_65, %c0_66] : memref<8x8x32xf32, #tpu.memory_space<vmem>>, vector<1x8x32xf32>
    %121 = vector.shape_cast %120 : vector<1x8x32xf32> to vector<8x32xf32>
    %122 = arith.addf %118, %121 : vector<8x32xf32>
    %123 = arith.index_cast %c2_i32 : i32 to index
    %c0_67 = arith.constant 0 : index
    %c0_68 = arith.constant 0 : index
    %124 = vector.load %arg15[%123, %c0_67, %c0_68] : memref<8x8x32xf32, #tpu.memory_space<vmem>>, vector<1x8x32xf32>
    %125 = vector.shape_cast %124 : vector<1x8x32xf32> to vector<8x32xf32>
    %126 = vector.shape_cast %122 : vector<8x32xf32> to vector<1x8x32xf32>
    tpu.vector_store %arg15[%123, %c0_67, %c0_68], %126 {strides = array<i32>} : memref<8x8x32xf32, #tpu.memory_space<vmem>>, vector<1x8x32xf32>,
    %c3_i32 = arith.constant 3 : i32
    %127 = arith.index_cast %c3_i32 : i32 to index
    %c0_69 = arith.constant 0 : index
    %c0_70 = arith.constant 0 : index
    %128 = vector.load %arg18[%127, %c0_69, %c0_70] : memref<8x8x32xf32, #tpu.memory_space<vmem>>, vector<1x8x32xf32>
    %129 = vector.shape_cast %128 : vector<1x8x32xf32> to vector<8x32xf32>
    %130 = arith.mulf %129, %122 : vector<8x32xf32>
    %131 = arith.index_cast %c3_i32 : i32 to index
    %c0_71 = arith.constant 0 : index
    %c0_72 = arith.constant 0 : index
    %132 = vector.load %arg19[%131, %c0_71, %c0_72] : memref<8x8x32xf32, #tpu.memory_space<vmem>>, vector<1x8x32xf32>
    %133 = vector.shape_cast %132 : vector<1x8x32xf32> to vector<8x32xf32>
    %134 = arith.addf %130, %133 : vector<8x32xf32>
    %135 = arith.index_cast %c3_i32 : i32 to index
    %c0_73 = arith.constant 0 : index
    %c0_74 = arith.constant 0 : index
    %136 = vector.load %arg15[%135, %c0_73, %c0_74] : memref<8x8x32xf32, #tpu.memory_space<vmem>>, vector<1x8x32xf32>
    %137 = vector.shape_cast %136 : vector<1x8x32xf32> to vector<8x32xf32>
    %138 = vector.shape_cast %134 : vector<8x32xf32> to vector<1x8x32xf32>
    tpu.vector_store %arg15[%135, %c0_73, %c0_74], %138 {strides = array<i32>} : memref<8x8x32xf32, #tpu.memory_space<vmem>>, vector<1x8x32xf32>,
    %c4_i32 = arith.constant 4 : i32
    %139 = arith.index_cast %c4_i32 : i32 to index
    %c0_75 = arith.constant 0 : index
    %c0_76 = arith.constant 0 : index
    %140 = vector.load %arg18[%139, %c0_75, %c0_76] : memref<8x8x32xf32, #tpu.memory_space<vmem>>, vector<1x8x32xf32>
    %141 = vector.shape_cast %140 : vector<1x8x32xf32> to vector<8x32xf32>
    %142 = arith.mulf %141, %134 : vector<8x32xf32>
    %143 = arith.index_cast %c4_i32 : i32 to index
    %c0_77 = arith.constant 0 : index
    %c0_78 = arith.constant 0 : index
    %144 = vector.load %arg19[%143, %c0_77, %c0_78] : memref<8x8x32xf32, #tpu.memory_space<vmem>>, vector<1x8x32xf32>
    %145 = vector.shape_cast %144 : vector<1x8x32xf32> to vector<8x32xf32>
    %146 = arith.addf %142, %145 : vector<8x32xf32>
    %147 = arith.index_cast %c4_i32 : i32 to index
    %c0_79 = arith.constant 0 : index
    %c0_80 = arith.constant 0 : index
    %148 = vector.load %arg15[%147, %c0_79, %c0_80] : memref<8x8x32xf32, #tpu.memory_space<vmem>>, vector<1x8x32xf32>
    %149 = vector.shape_cast %148 : vector<1x8x32xf32> to vector<8x32xf32>
    %150 = vector.shape_cast %146 : vector<8x32xf32> to vector<1x8x32xf32>
    tpu.vector_store %arg15[%147, %c0_79, %c0_80], %150 {strides = array<i32>} : memref<8x8x32xf32, #tpu.memory_space<vmem>>, vector<1x8x32xf32>,
    %c5_i32 = arith.constant 5 : i32
    %151 = arith.index_cast %c5_i32 : i32 to index
    %c0_81 = arith.constant 0 : index
    %c0_82 = arith.constant 0 : index
    %152 = vector.load %arg18[%151, %c0_81, %c0_82] : memref<8x8x32xf32, #tpu.memory_space<vmem>>, vector<1x8x32xf32>
    %153 = vector.shape_cast %152 : vector<1x8x32xf32> to vector<8x32xf32>
    %154 = arith.mulf %153, %146 : vector<8x32xf32>
    %155 = arith.index_cast %c5_i32 : i32 to index
    %c0_83 = arith.constant 0 : index
    %c0_84 = arith.constant 0 : index
    %156 = vector.load %arg19[%155, %c0_83, %c0_84] : memref<8x8x32xf32, #tpu.memory_space<vmem>>, vector<1x8x32xf32>
    %157 = vector.shape_cast %156 : vector<1x8x32xf32> to vector<8x32xf32>
    %158 = arith.addf %154, %157 : vector<8x32xf32>
    %159 = arith.index_cast %c5_i32 : i32 to index
    %c0_85 = arith.constant 0 : index
    %c0_86 = arith.constant 0 : index
    %160 = vector.load %arg15[%159, %c0_85, %c0_86] : memref<8x8x32xf32, #tpu.memory_space<vmem>>, vector<1x8x32xf32>
    %161 = vector.shape_cast %160 : vector<1x8x32xf32> to vector<8x32xf32>
    %162 = vector.shape_cast %158 : vector<8x32xf32> to vector<1x8x32xf32>
    tpu.vector_store %arg15[%159, %c0_85, %c0_86], %162 {strides = array<i32>} : memref<8x8x32xf32, #tpu.memory_space<vmem>>, vector<1x8x32xf32>,
    %c6_i32 = arith.constant 6 : i32
    %163 = arith.index_cast %c6_i32 : i32 to index
    %c0_87 = arith.constant 0 : index
    %c0_88 = arith.constant 0 : index
    %164 = vector.load %arg18[%163, %c0_87, %c0_88] : memref<8x8x32xf32, #tpu.memory_space<vmem>>, vector<1x8x32xf32>
    %165 = vector.shape_cast %164 : vector<1x8x32xf32> to vector<8x32xf32>
    %166 = arith.mulf %165, %158 : vector<8x32xf32>
    %167 = arith.index_cast %c6_i32 : i32 to index
    %c0_89 = arith.constant 0 : index
    %c0_90 = arith.constant 0 : index
    %168 = vector.load %arg19[%167, %c0_89, %c0_90] : memref<8x8x32xf32, #tpu.memory_space<vmem>>, vector<1x8x32xf32>
    %169 = vector.shape_cast %168 : vector<1x8x32xf32> to vector<8x32xf32>
    %170 = arith.addf %166, %169 : vector<8x32xf32>
    %171 = arith.index_cast %c6_i32 : i32 to index
    %c0_91 = arith.constant 0 : index
    %c0_92 = arith.constant 0 : index
    %172 = vector.load %arg15[%171, %c0_91, %c0_92] : memref<8x8x32xf32, #tpu.memory_space<vmem>>, vector<1x8x32xf32>
    %173 = vector.shape_cast %172 : vector<1x8x32xf32> to vector<8x32xf32>
    %174 = vector.shape_cast %170 : vector<8x32xf32> to vector<1x8x32xf32>
    tpu.vector_store %arg15[%171, %c0_91, %c0_92], %174 {strides = array<i32>} : memref<8x8x32xf32, #tpu.memory_space<vmem>>, vector<1x8x32xf32>,
    %c7_i32 = arith.constant 7 : i32
    %175 = arith.index_cast %c7_i32 : i32 to index
    %c0_93 = arith.constant 0 : index
    %c0_94 = arith.constant 0 : index
    %176 = vector.load %arg18[%175, %c0_93, %c0_94] : memref<8x8x32xf32, #tpu.memory_space<vmem>>, vector<1x8x32xf32>
    %177 = vector.shape_cast %176 : vector<1x8x32xf32> to vector<8x32xf32>
    %178 = arith.mulf %177, %170 : vector<8x32xf32>
    %179 = arith.index_cast %c7_i32 : i32 to index
    %c0_95 = arith.constant 0 : index
    %c0_96 = arith.constant 0 : index
    %180 = vector.load %arg19[%179, %c0_95, %c0_96] : memref<8x8x32xf32, #tpu.memory_space<vmem>>, vector<1x8x32xf32>
    %181 = vector.shape_cast %180 : vector<1x8x32xf32> to vector<8x32xf32>
    %182 = arith.addf %178, %181 : vector<8x32xf32>
    %183 = arith.index_cast %c7_i32 : i32 to index
    %c0_97 = arith.constant 0 : index
    %c0_98 = arith.constant 0 : index
    %184 = vector.load %arg15[%183, %c0_97, %c0_98] : memref<8x8x32xf32, #tpu.memory_space<vmem>>, vector<1x8x32xf32>
    %185 = vector.shape_cast %184 : vector<1x8x32xf32> to vector<8x32xf32>
    %186 = vector.shape_cast %182 : vector<8x32xf32> to vector<1x8x32xf32>
    tpu.vector_store %arg15[%183, %c0_97, %c0_98], %186 {strides = array<i32>} : memref<8x8x32xf32, #tpu.memory_space<vmem>>, vector<1x8x32xf32>,
    %c8_i32 = arith.constant 8 : i32
    %c0_99 = arith.constant 0 : index
    %c0_100 = arith.constant 0 : index
    %187 = vector.load %arg16[%c0_99, %c0_100] : memref<8x32xf32, #tpu.memory_space<vmem>>, vector<8x32xf32>
    tpu.vector_store %arg16[%c0_99, %c0_100], %182 {strides = array<i32>} : memref<8x32xf32, #tpu.memory_space<vmem>>, vector<8x32xf32>,
    %c1_i32_101 = arith.constant 1 : i32
    %188 = arith.addi %arg1, %c1_i32_101 : i32
    %c1_i32_102 = arith.constant 1 : i32
    %189 = arith.cmpi slt, %188, %c1_i32_102 : i32
    %190 = arith.extui %189 : i1 to i32
    %c0_i32_103 = arith.constant 0 : i32
    %191 = arith.cmpi ne, %190, %c0_i32_103 : i32
    scf.if %191 {
      %c8 = arith.constant 8 : index
      %c0_124 = arith.constant 0 : index
      %c0_125 = arith.constant 0 : index
      %221 = vector.load %arg17[%c8, %c0_124, %c0_125] : memref<11x8x32xf32, #tpu.memory_space<vmem>>, vector<3x8x32xf32>
      %c0_126 = arith.constant 0 : index
      %c0_127 = arith.constant 0 : index
      %c0_128 = arith.constant 0 : index
      %222 = vector.load %arg17[%c0_126, %c0_127, %c0_128] : memref<11x8x32xf32, #tpu.memory_space<vmem>>, vector<3x8x32xf32>
      tpu.vector_store %arg17[%c0_126, %c0_127, %c0_128], %221 {strides = array<i32>} : memref<11x8x32xf32, #tpu.memory_space<vmem>>, vector<3x8x32xf32>,
    } else {
    }
    %c0_104 = arith.constant 0 : index
    %c0_105 = arith.constant 0 : index
    %192 = vector.load %arg5[%c0_104, %c0_105] : memref<32x32xbf16, #tpu.memory_space<vmem>>, vector<32x32xbf16>
    %cst_106 = arith.constant dense<0.000000e+00> : vector<64x32xf32>
    %193 = tpu.matmul %5, %192, %cst_106 {dimension_numbers = #tpu.dot_dimension_numbers<[1], [0], [0], [1], [0, 0, 1, 1], [], []>} : vector<64x32xbf16>, vector<32x32xbf16>, vector<64x32xf32> -> vector<64x32xf32>
    %c0_107 = arith.constant 0 : index
    %c0_108 = arith.constant 0 : index
    %194 = vector.load %arg6[%c0_107, %c0_108] : memref<1x32xf32, #tpu.memory_space<vmem>>, vector<1x32xf32>
    %195 = vector.broadcast %194 : vector<1x32xf32> to vector<64x32xf32>
    %196 = arith.addf %193, %195 : vector<64x32xf32>
    %cst_109 = arith.constant 5.000000e-01 : f32
    %197 = vector.broadcast %cst_109 : f32 to vector<64x32xf32>
    %198 = arith.mulf %197, %196 : vector<64x32xf32>
    %cst_110 = arith.constant 4.471500e-02 : f32
    %199 = vector.broadcast %cst_110 : f32 to vector<64x32xf32>
    %200 = arith.mulf %199, %196 : vector<64x32xf32>
    %201 = arith.mulf %200, %196 : vector<64x32xf32>
    %202 = arith.mulf %201, %196 : vector<64x32xf32>
    %203 = arith.addf %196, %202 : vector<64x32xf32>
    %cst_111 = arith.constant 0.797884583 : f32
    %204 = vector.broadcast %cst_111 : f32 to vector<64x32xf32>
    %205 = arith.mulf %204, %203 : vector<64x32xf32>
    %206 = math.tanh %205 : vector<64x32xf32>
    %cst_112 = arith.constant 1.000000e+00 : f32
    %207 = vector.broadcast %cst_112 : f32 to vector<64x32xf32>
    %208 = arith.addf %207, %206 : vector<64x32xf32>
    %209 = arith.mulf %198, %208 : vector<64x32xf32>
    %c0_113 = arith.constant 0 : index
    %c0_114 = arith.constant 0 : index
    %c0_115 = arith.constant 0 : index
    %210 = vector.load %arg15[%c0_113, %c0_114, %c0_115] : memref<8x8x32xf32, #tpu.memory_space<vmem>>, vector<8x8x32xf32>
    %211 = vector.shape_cast %210 : vector<8x8x32xf32> to vector<64x32xf32>
    %212 = arith.mulf %211, %209 : vector<64x32xf32>
    %213 = arith.truncf %212 : vector<64x32xf32> to vector<64x32xbf16>
    %c0_116 = arith.constant 0 : index
    %c0_117 = arith.constant 0 : index
    %214 = vector.load %arg12[%c0_116, %c0_117] : memref<32x32xbf16, #tpu.memory_space<vmem>>, vector<32x32xbf16>
    %cst_118 = arith.constant dense<0.000000e+00> : vector<64x32xf32>
    %215 = tpu.matmul %213, %214, %cst_118 {dimension_numbers = #tpu.dot_dimension_numbers<[1], [0], [0], [1], [0, 0, 1, 1], [], []>} : vector<64x32xbf16>, vector<32x32xbf16>, vector<64x32xf32> -> vector<64x32xf32>
    %c0_119 = arith.constant 0 : index
    %c0_120 = arith.constant 0 : index
    %216 = vector.load %arg13[%c0_119, %c0_120] : memref<1x32xf32, #tpu.memory_space<vmem>>, vector<1x32xf32>
    %217 = vector.broadcast %216 : vector<1x32xf32> to vector<64x32xf32>
    %218 = arith.addf %215, %217 : vector<64x32xf32>
    %219 = vector.shape_cast %218 : vector<64x32xf32> to vector<8x8x32xf32>
    %c0_121 = arith.constant 0 : index
    %c0_122 = arith.constant 0 : index
    %c0_123 = arith.constant 0 : index
    %220 = vector.load %arg14[%c0_121, %c0_122, %c0_123] : memref<8x8x32xf32, #tpu.memory_space<vmem>>, vector<8x8x32xf32>
    tpu.vector_store %arg14[%c0_121, %c0_122, %c0_123], %219 {strides = array<i32>} : memref<8x8x32xf32, #tpu.memory_space<vmem>>, vector<8x8x32xf32>,
    return
  }
  func.func @transform_0(%arg0: i32, %arg1: i32) -> (i32, i32, i32) {
    %c0_i32 = arith.constant 0 : i32
    %c0_i32_0 = arith.constant 0 : i32
    return %arg1, %arg0, %c0_i32 : i32, i32, i32
  }
  func.func @transform_1(%arg0: i32, %arg1: i32) -> (i32, i32) {
    %c0_i32 = arith.constant 0 : i32
    %c0_i32_0 = arith.constant 0 : i32
    %c0_i32_1 = arith.constant 0 : i32
    return %c0_i32, %c0_i32_0 : i32, i32
  }
  func.func @transform_2(%arg0: i32, %arg1: i32) -> (i32, i32) {
    %c0_i32 = arith.constant 0 : i32
    %c0_i32_0 = arith.constant 0 : i32
    %c0_i32_1 = arith.constant 0 : i32
    return %c0_i32, %c0_i32_0 : i32, i32
  }
  func.func @transform_3(%arg0: i32, %arg1: i32) -> (i32, i32) {
    %c0_i32 = arith.constant 0 : i32
    %c0_i32_0 = arith.constant 0 : i32
    %c0_i32_1 = arith.constant 0 : i32
    return %c0_i32, %c0_i32_0 : i32, i32
  }
  func.func @transform_4(%arg0: i32, %arg1: i32) -> (i32, i32) {
    %c0_i32 = arith.constant 0 : i32
    %c0_i32_0 = arith.constant 0 : i32
    %c0_i32_1 = arith.constant 0 : i32
    return %c0_i32, %c0_i32_0 : i32, i32
  }
  func.func @transform_5(%arg0: i32, %arg1: i32) -> (i32, i32) {
    %c0_i32 = arith.constant 0 : i32
    %c0_i32_0 = arith.constant 0 : i32
    %c0_i32_1 = arith.constant 0 : i32
    return %c0_i32, %c0_i32_0 : i32, i32
  }
  func.func @transform_6(%arg0: i32, %arg1: i32) -> (i32, i32) {
    %c0_i32 = arith.constant 0 : i32
    %c0_i32_0 = arith.constant 0 : i32
    %c0_i32_1 = arith.constant 0 : i32
    return %c0_i32, %c0_i32_0 : i32, i32
  }
  func.func @transform_7(%arg0: i32, %arg1: i32) -> (i32, i32) {
    %c0_i32 = arith.constant 0 : i32
    %c0_i32_0 = arith.constant 0 : i32
    %c0_i32_1 = arith.constant 0 : i32
    return %c0_i32, %c0_i32_0 : i32, i32
  }
  func.func @transform_8(%arg0: i32, %arg1: i32) -> (i32, i32) {
    %c0_i32 = arith.constant 0 : i32
    %c0_i32_0 = arith.constant 0 : i32
    %c0_i32_1 = arith.constant 0 : i32
    return %c0_i32, %c0_i32_0 : i32, i32
  }
  func.func @transform_9(%arg0: i32, %arg1: i32) -> (i32, i32) {
    %c0_i32 = arith.constant 0 : i32
    %c0_i32_0 = arith.constant 0 : i32
    %c0_i32_1 = arith.constant 0 : i32
    return %c0_i32, %c0_i32_0 : i32, i32
  }
  func.func @transform_10(%arg0: i32, %arg1: i32) -> (i32, i32) {
    %c0_i32 = arith.constant 0 : i32
    %c0_i32_0 = arith.constant 0 : i32
    %c0_i32_1 = arith.constant 0 : i32
    return %c0_i32, %c0_i32_0 : i32, i32
  }
  func.func @transform_11(%arg0: i32, %arg1: i32) -> (i32, i32) {
    %c0_i32 = arith.constant 0 : i32
    %c0_i32_0 = arith.constant 0 : i32
    %c0_i32_1 = arith.constant 0 : i32
    return %c0_i32, %c0_i32_0 : i32, i32
  }
  func.func @transform_12(%arg0: i32, %arg1: i32) -> (i32, i32, i32) {
    %c0_i32 = arith.constant 0 : i32
    %c0_i32_0 = arith.constant 0 : i32
    return %arg1, %arg0, %c0_i32 : i32, i32, i32
  }
  func.func @transform_13(%arg0: i32, %arg1: i32) -> (i32, i32, i32) {
    %c0_i32 = arith.constant 0 : i32
    %c0_i32_0 = arith.constant 0 : i32
    return %arg1, %arg0, %c0_i32 : i32, i32, i32
  }
}

</mosaic_0001>

<llo_original>
// kernel: griffin_recurrent_block.1
$region0: #{griffin_recurrent_block.1}
  #allocation0 [shape = 'u32[]', space=smem, size = 0x4, offset = 0x4, fixed_abs, tag = 'smem constant byte address 0x4 - core index']
  #allocation1 [shape = 'u32[144,128]{1,0:T(1,128)}', space=vmem, size = 0x12000, scoped, tag = 'internal scratch']
  #allocation2 [shape = 'f32[8,32]{1,0:T(8,128)}', space=vmem, size = 0x1000, scoped, tag = 'scratch operand']
  #allocation3 [shape = 'f32[11,8,32]{2,1,0:T(8,128)}', space=vmem, size = 0xb000, scoped, tag = 'scratch operand']
  #allocation4 [shape = 'f32[8,8,32]{2,1,0:T(8,128)}', space=vmem, size = 0x8000, scoped, tag = 'scratch operand']
  #allocation5 [shape = 'f32[8,8,32]{2,1,0:T(8,128)}', space=vmem, size = 0x8000, scoped, tag = 'scratch operand']
  %s0 = inlined_call_operand.hbm [shape: f32[8,8,32], index: 0, kind: input, shape index: {}]
  %s1 = inlined_call_operand.hbm [shape: bf16[32,32], index: 1, kind: input, shape index: {}]
  %s2 = inlined_call_operand.hbm [shape: f32[1,32], index: 2, kind: input, shape index: {}]
  %s3 = inlined_call_operand.hbm [shape: bf16[32,32], index: 3, kind: input, shape index: {}]
  %s4 = inlined_call_operand.hbm [shape: f32[1,32], index: 4, kind: input, shape index: {}]
  %s5 = inlined_call_operand.hbm [shape: f32[4,32], index: 5, kind: input, shape index: {}]
  %s6 = inlined_call_operand.hbm [shape: f32[1,32], index: 6, kind: input, shape index: {}]
  %s7 = inlined_call_operand.hbm [shape: bf16[32,160], index: 7, kind: input, shape index: {}]
  %s8 = inlined_call_operand.hbm [shape: f32[1,160], index: 8, kind: input, shape index: {}]
  %s9 = inlined_call_operand.hbm [shape: f32[1,32], index: 9, kind: input, shape index: {}]
  %s10 = inlined_call_operand.hbm [shape: bf16[32,32], index: 10, kind: input, shape index: {}]
  %s11 = inlined_call_operand.hbm [shape: f32[1,32], index: 11, kind: input, shape index: {}]
  %s12 = inlined_call_operand.hbm [shape: f32[8,8,32], index: 12, kind: output, shape index: {0}]
  %s13 = inlined_call_operand.hbm [shape: f32[8,8,32], index: 13, kind: output, shape index: {1}]
  %14 = xla_tuple %s12, %s13
  %s15 = sld [smem:[#allocation0]]
  $region126: #{griffin_recurrent_block.1} parent=0
    _
  %s17 = ssub.s32 1, %s15
  %s18 = scalar_select 0, %s17, %s15
  $region1: #{griffin_recurrent_block.1} parent=0
    #allocation6 [shape = 'u8[32768]{0}', space=vmem, size = 0x8000, scoped, tag = 'input window, operand 0, single buffered']
    #allocation7 [shape = 's32[1]{0}', space=sflag, size = 0x4, scoped, tag = 'scoped memory for griffin_recurrent_block.1']
    #allocation8 [shape = 's32[1]{0}', space=sflag, size = 0x4, scoped, tag = 'scoped memory for griffin_recurrent_block.1']
    #allocation9 [shape = 'u8[8192]{0}', space=vmem, size = 0x2000, scoped, tag = 'input window, operand 1, single buffered']
    #allocation10 [shape = 's32[1]{0}', space=sflag, size = 0x4, scoped, tag = 'scoped memory for griffin_recurrent_block.1']
    #allocation11 [shape = 'u8[512]{0}', space=vmem, size = 0x400, scoped, tag = 'input window, operand 2, single buffered']
    #allocation12 [shape = 'u8[8192]{0}', space=vmem, size = 0x2000, scoped, tag = 'input window, operand 3, single buffered']
    #allocation13 [shape = 's32[1]{0}', space=sflag, size = 0x4, scoped, tag = 'scoped memory for griffin_recurrent_block.1']
    #allocation14 [shape = 'u8[512]{0}', space=vmem, size = 0x400, scoped, tag = 'input window, operand 4, single buffered']
    #allocation15 [shape = 'u8[2048]{0}', space=vmem, size = 0x800, scoped, tag = 'input window, operand 5, single buffered']
    #allocation16 [shape = 's32[1]{0}', space=sflag, size = 0x4, scoped, tag = 'scoped memory for griffin_recurrent_block.1']
    #allocation17 [shape = 'u8[512]{0}', space=vmem, size = 0x400, scoped, tag = 'input window, operand 6, single buffered']
    #allocation18 [shape = 'u8[16384]{0}', space=vmem, size = 0x4000, scoped, tag = 'input window, operand 7, single buffered']
    #allocation19 [shape = 's32[1]{0}', space=sflag, size = 0x4, scoped, tag = 'scoped memory for griffin_recurrent_block.1']
    #allocation20 [shape = 'u8[1024]{0}', space=vmem, size = 0x400, scoped, tag = 'input window, operand 8, single buffered']
    #allocation21 [shape = 'u8[512]{0}', space=vmem, size = 0x400, scoped, tag = 'input window, operand 9, single buffered']
    #allocation22 [shape = 's32[1]{0}', space=sflag, size = 0x4, scoped, tag = 'scoped memory for griffin_recurrent_block.1']
    #allocation23 [shape = 'u8[8192]{0}', space=vmem, size = 0x2000, scoped, tag = 'input window, operand 10, single buffered']
    #allocation24 [shape = 'u8[512]{0}', space=vmem, size = 0x400, scoped, tag = 'input window, operand 11, single buffered']
    #allocation25 [shape = 's32[1]{0}', space=sflag, size = 0x4, scoped, tag = 'scoped memory for griffin_recurrent_block.1']
    #allocation26 [shape = 'u8[32768]{0}', space=vmem, size = 0x8000, scoped, tag = 'output window, operand 0, single buffered']
    #allocation27 [shape = 'u8[32768]{0}', space=vmem, size = 0x8000, scoped, tag = 'output window, operand 1, single buffered']
    #allocation28 [shape = 's32[1]{0}', space=sflag, size = 0x4, scoped, tag = 'scoped memory for griffin_recurrent_block.1']
    %19 = vsyncpa [#allocation7], 0
    %20 = vsyncpa [#allocation10], 0
    %21 = vsyncpa [#allocation13], 0
    %22 = vsyncpa [#allocation16], 0
    %23 = vsyncpa [#allocation19], 0
    %24 = vsyncpa [#allocation22], 0
    %25 = vsyncpa [#allocation25], 0
    %26 = vsyncpa [#allocation8], 0
    %27 = vsyncpa [#allocation28], 0
    // Predicated region
    $region2: #{griffin_recurrent_block.1} parent=1 // pred_check
      _
    $region3: #{griffin_recurrent_block.1} parent=1 // pred_check_branch
      %29 = sbr.rel (0) target = $region5
    $region4: #{griffin_recurrent_block.1} parent=1 // pred_region
      %s31 = ssub.s32 1024, 1024
      %32 = vsyncadd [#allocation7], %s31
      %s33 = sshll.u32 [#allocation6], 4
      %s34 = int_to_ptr.vmem [resolvable:$true] %s33
      %39 = dma.hbm_to_vmem [thread:$0]  %s0, 1024, %s34, [#allocation7], 128, 128, 8
    $region5: #{griffin_recurrent_block.1} parent=1 // pred_fallthru
      _
    // Predicated region
    $region6: #{griffin_recurrent_block.1} parent=1 // pred_check
      _
    $region7: #{griffin_recurrent_block.1} parent=1 // pred_check_branch
      %41 = sbr.rel (0) target = $region9
    $region8: #{griffin_recurrent_block.1} parent=1 // pred_region
      %s43 = ssub.s32 256, 256
      %44 = vsyncadd [#allocation10], %s43
      %s45 = sshll.u32 [#allocation9], 4
      %s46 = int_to_ptr.vmem [resolvable:$true] %s45
      %51 = dma.hbm_to_vmem [thread:$0]  %s1, 256, %s46, [#allocation10], 64, 64, 4
    $region9: #{griffin_recurrent_block.1} parent=1 // pred_fallthru
      _
    // Predicated region
    $region10: #{griffin_recurrent_block.1} parent=1 // pred_check
      _
    $region11: #{griffin_recurrent_block.1} parent=1 // pred_check_branch
      %53 = sbr.rel (0) target = $region13
    $region12: #{griffin_recurrent_block.1} parent=1 // pred_region
      %s55 = ssub.s32 16, 16
      %56 = vsyncadd [#allocation10], %s55
      %s58 = sshll.u32 [#allocation11], 4
      %s59 = int_to_ptr.vmem [resolvable:$true] %s58
      %61 = dma.hbm_to_vmem [thread:$0]  %s2, 16, %s59, [#allocation10]
    $region13: #{griffin_recurrent_block.1} parent=1 // pred_fallthru
      _
    // Predicated region
    $region14: #{griffin_recurrent_block.1} parent=1 // pred_check
      _
    $region15: #{griffin_recurrent_block.1} parent=1 // pred_check_branch
      %63 = sbr.rel (0) target = $region17
    $region16: #{griffin_recurrent_block.1} parent=1 // pred_region
      %s65 = ssub.s32 256, 256
      %66 = vsyncadd [#allocation13], %s65
      %s67 = sshll.u32 [#allocation12], 4
      %s68 = int_to_ptr.vmem [resolvable:$true] %s67
      %73 = dma.hbm_to_vmem [thread:$0]  %s3, 256, %s68, [#allocation13], 64, 64, 4
    $region17: #{griffin_recurrent_block.1} parent=1 // pred_fallthru
      _
    // Predicated region
    $region18: #{griffin_recurrent_block.1} parent=1 // pred_check
      _
    $region19: #{griffin_recurrent_block.1} parent=1 // pred_check_branch
      %75 = sbr.rel (0) target = $region21
    $region20: #{griffin_recurrent_block.1} parent=1 // pred_region
      %s77 = ssub.s32 16, 16
      %78 = vsyncadd [#allocation13], %s77
      %s80 = sshll.u32 [#allocation14], 4
      %s81 = int_to_ptr.vmem [resolvable:$true] %s80
      %83 = dma.hbm_to_vmem [thread:$0]  %s4, 16, %s81, [#allocation13]
    $region21: #{griffin_recurrent_block.1} parent=1 // pred_fallthru
      _
    // Predicated region
    $region22: #{griffin_recurrent_block.1} parent=1 // pred_check
      _
    $region23: #{griffin_recurrent_block.1} parent=1 // pred_check_branch
      %85 = sbr.rel (0) target = $region25
    $region24: #{griffin_recurrent_block.1} parent=1 // pred_region
      %s87 = ssub.s32 64, 64
      %88 = vsyncadd [#allocation16], %s87
      %s90 = sshll.u32 [#allocation15], 4
      %s91 = int_to_ptr.vmem [resolvable:$true] %s90
      %93 = dma.hbm_to_vmem [thread:$0]  %s5, 64, %s91, [#allocation16]
    $region25: #{griffin_recurrent_block.1} parent=1 // pred_fallthru
      _
    // Predicated region
    $region26: #{griffin_recurrent_block.1} parent=1 // pred_check
      _
    $region27: #{griffin_recurrent_block.1} parent=1 // pred_check_branch
      %95 = sbr.rel (0) target = $region29
    $region28: #{griffin_recurrent_block.1} parent=1 // pred_region
      %s97 = ssub.s32 16, 16
      %98 = vsyncadd [#allocation16], %s97
      %s100 = sshll.u32 [#allocation17], 4
      %s101 = int_to_ptr.vmem [resolvable:$true] %s100
      %103 = dma.hbm_to_vmem [thread:$0]  %s6, 16, %s101, [#allocation16]
    $region29: #{griffin_recurrent_block.1} parent=1 // pred_fallthru
      _
    // Predicated region
    $region30: #{griffin_recurrent_block.1} parent=1 // pred_check
      _
    $region31: #{griffin_recurrent_block.1} parent=1 // pred_check_branch
      %105 = sbr.rel (0) target = $region33
    $region32: #{griffin_recurrent_block.1} parent=1 // pred_region
      %s107 = ssub.s32 512, 512
      %108 = vsyncadd [#allocation19], %s107
      %s109 = sshll.u32 [#allocation18], 4
      %s110 = int_to_ptr.vmem [resolvable:$true] %s109
      %115 = dma.hbm_to_vmem [thread:$0]  %s7, 512, %s110, [#allocation19], 128, 128, 8
    $region33: #{griffin_recurrent_block.1} parent=1 // pred_fallthru
      _
    // Predicated region
    $region34: #{griffin_recurrent_block.1} parent=1 // pred_check
      _
    $region35: #{griffin_recurrent_block.1} parent=1 // pred_check_branch
      %117 = sbr.rel (0) target = $region37
    $region36: #{griffin_recurrent_block.1} parent=1 // pred_region
      %s119 = ssub.s32 32, 32
      %120 = vsyncadd [#allocation19], %s119
      %s122 = sshll.u32 [#allocation20], 4
      %s123 = int_to_ptr.vmem [resolvable:$true] %s122
      %125 = dma.hbm_to_vmem [thread:$0]  %s8, 32, %s123, [#allocation19]
    $region37: #{griffin_recurrent_block.1} parent=1 // pred_fallthru
      _
    // Predicated region
    $region38: #{griffin_recurrent_block.1} parent=1 // pred_check
      _
    $region39: #{griffin_recurrent_block.1} parent=1 // pred_check_branch
      %127 = sbr.rel (0) target = $region41
    $region40: #{griffin_recurrent_block.1} parent=1 // pred_region
      %s129 = ssub.s32 16, 16
      %130 = vsyncadd [#allocation22], %s129
      %s132 = sshll.u32 [#allocation21], 4
      %s133 = int_to_ptr.vmem [resolvable:$true] %s132
      %135 = dma.hbm_to_vmem [thread:$0]  %s9, 16, %s133, [#allocation22]
    $region41: #{griffin_recurrent_block.1} parent=1 // pred_fallthru
      _
    // Predicated region
    $region42: #{griffin_recurrent_block.1} parent=1 // pred_check
      _
    $region43: #{griffin_recurrent_block.1} parent=1 // pred_check_branch
      %137 = sbr.rel (0) target = $region45
    $region44: #{griffin_recurrent_block.1} parent=1 // pred_region
      %s139 = ssub.s32 256, 256
      %140 = vsyncadd [#allocation22], %s139
      %s141 = sshll.u32 [#allocation23], 4
      %s142 = int_to_ptr.vmem [resolvable:$true] %s141
      %147 = dma.hbm_to_vmem [thread:$0]  %s10, 256, %s142, [#allocation22], 64, 64, 4
    $region45: #{griffin_recurrent_block.1} parent=1 // pred_fallthru
      _
    // Predicated region
    $region46: #{griffin_recurrent_block.1} parent=1 // pred_check
      _
    $region47: #{griffin_recurrent_block.1} parent=1 // pred_check_branch
      %149 = sbr.rel (0) target = $region49
    $region48: #{griffin_recurrent_block.1} parent=1 // pred_region
      %s151 = ssub.s32 16, 16
      %152 = vsyncadd [#allocation25], %s151
      %s154 = sshll.u32 [#allocation24], 4
      %s155 = int_to_ptr.vmem [resolvable:$true] %s154
      %157 = dma.hbm_to_vmem [thread:$0]  %s11, 16, %s155, [#allocation25]
    $region49: #{griffin_recurrent_block.1} parent=1 // pred_fallthru
      _
    // Predicated region
    $region50: #{griffin_recurrent_block.1} parent=1 // pred_check
      _
    $region51: #{griffin_recurrent_block.1} parent=1 // pred_check_branch
      %159 = sbr.rel (0) target = $region53
    $region52: #{griffin_recurrent_block.1} parent=1 // pred_region
      %160 = dma.done [#allocation7], 1024
    $region53: #{griffin_recurrent_block.1} parent=1 // pred_fallthru
      _
    // Predicated region
    $region54: #{griffin_recurrent_block.1} parent=1 // pred_check
      _
    $region55: #{griffin_recurrent_block.1} parent=1 // pred_check_branch
      %162 = sbr.rel (0) target = $region57
    $region56: #{griffin_recurrent_block.1} parent=1 // pred_region
      %163 = dma.done [#allocation10], 256
    $region57: #{griffin_recurrent_block.1} parent=1 // pred_fallthru
      _
    // Predicated region
    $region58: #{griffin_recurrent_block.1} parent=1 // pred_check
      _
    $region59: #{griffin_recurrent_block.1} parent=1 // pred_check_branch
      %165 = sbr.rel (0) target = $region61
    $region60: #{griffin_recurrent_block.1} parent=1 // pred_region
      %166 = dma.done [#allocation10], 16
    $region61: #{griffin_recurrent_block.1} parent=1 // pred_fallthru
      _
    // Predicated region
    $region62: #{griffin_recurrent_block.1} parent=1 // pred_check
      _
    $region63: #{griffin_recurrent_block.1} parent=1 // pred_check_branch
      %168 = sbr.rel (0) target = $region65
    $region64: #{griffin_recurrent_block.1} parent=1 // pred_region
      %169 = dma.done [#allocation13], 256
    $region65: #{griffin_recurrent_block.1} parent=1 // pred_fallthru
      _
    // Predicated region
    $region66: #{griffin_recurrent_block.1} parent=1 // pred_check
      _
    $region67: #{griffin_recurrent_block.1} parent=1 // pred_check_branch
      %171 = sbr.rel (0) target = $region69
    $region68: #{griffin_recurrent_block.1} parent=1 // pred_region
      %172 = dma.done [#allocation13], 16
    $region69: #{griffin_recurrent_block.1} parent=1 // pred_fallthru
      _
    // Predicated region
    $region70: #{griffin_recurrent_block.1} parent=1 // pred_check
      _
    $region71: #{griffin_recurrent_block.1} parent=1 // pred_check_branch
      %174 = sbr.rel (0) target = $region73
    $region72: #{griffin_recurrent_block.1} parent=1 // pred_region
      %175 = dma.done [#allocation16], 64
    $region73: #{griffin_recurrent_block.1} parent=1 // pred_fallthru
      _
    // Predicated region
    $region74: #{griffin_recurrent_block.1} parent=1 // pred_check
      _
    $region75: #{griffin_recurrent_block.1} parent=1 // pred_check_branch
      %177 = sbr.rel (0) target = $region77
    $region76: #{griffin_recurrent_block.1} parent=1 // pred_region
      %178 = dma.done [#allocation16], 16
    $region77: #{griffin_recurrent_block.1} parent=1 // pred_fallthru
      _
    // Predicated region
    $region78: #{griffin_recurrent_block.1} parent=1 // pred_check
      _
    $region79: #{griffin_recurrent_block.1} parent=1 // pred_check_branch
      %180 = sbr.rel (0) target = $region81
    $region80: #{griffin_recurrent_block.1} parent=1 // pred_region
      %181 = dma.done [#allocation19], 512
    $region81: #{griffin_recurrent_block.1} parent=1 // pred_fallthru
      _
    // Predicated region
    $region82: #{griffin_recurrent_block.1} parent=1 // pred_check
      _
    $region83: #{griffin_recurrent_block.1} parent=1 // pred_check_branch
      %183 = sbr.rel (0) target = $region85
    $region84: #{griffin_recurrent_block.1} parent=1 // pred_region
      %184 = dma.done [#allocation19], 32
    $region85: #{griffin_recurrent_block.1} parent=1 // pred_fallthru
      _
    // Predicated region
    $region86: #{griffin_recurrent_block.1} parent=1 // pred_check
      _
    $region87: #{griffin_recurrent_block.1} parent=1 // pred_check_branch
      %186 = sbr.rel (0) target = $region89
    $region88: #{griffin_recurrent_block.1} parent=1 // pred_region
      %187 = dma.done [#allocation22], 16
    $region89: #{griffin_recurrent_block.1} parent=1 // pred_fallthru
      _
    // Predicated region
    $region90: #{griffin_recurrent_block.1} parent=1 // pred_check
      _
    $region91: #{griffin_recurrent_block.1} parent=1 // pred_check_branch
      %189 = sbr.rel (0) target = $region93
    $region92: #{griffin_recurrent_block.1} parent=1 // pred_region
      %190 = dma.done [#allocation22], 256
    $region93: #{griffin_recurrent_block.1} parent=1 // pred_fallthru
      _
    // Predicated region
    $region94: #{griffin_recurrent_block.1} parent=1 // pred_check
      _
    $region95: #{griffin_recurrent_block.1} parent=1 // pred_check_branch
      %192 = sbr.rel (0) target = $region97
    $region96: #{griffin_recurrent_block.1} parent=1 // pred_region
      %193 = dma.done [#allocation25], 16
    $region97: #{griffin_recurrent_block.1} parent=1 // pred_fallthru
      _
    %p195 = scmp.eq.s32.totalorder 0, 0
    // Predicated region
    $region98: #{griffin_recurrent_block.1} parent=1 // pred_check
      %p196 = pneg %p195
    $region99: #{griffin_recurrent_block.1} parent=1 // pred_check_branch
      %198 = sbr.rel (%p196) target = $region101
    $region100: #{griffin_recurrent_block.1} parent=1 // pred_region
      %vm199 = vcmask 261120
      %200 = vst.msk [vmem:[#allocation2] sm:$0xff] %vm199, 0.0
      %201 = vst.msk [vmem:[#allocation3] sm:$0xff] %vm199, 0.0
      %202 = vst.msk [vmem:[#allocation3 + $0x8] sm:$0xff] %vm199, 0.0
      %203 = vst.msk [vmem:[#allocation3 + $0x10] sm:$0xff] %vm199, 0.0
    $region101: #{griffin_recurrent_block.1} parent=1 // pred_fallthru
      _
    %v204 = vld [vmem:[#allocation6] sm:$0xff]
    %v205 = vld [vmem:[#allocation6 + $0x8] sm:$0xff]
    %v206 = vld [vmem:[#allocation6 + $0x10] sm:$0xff]
    %v207 = vld [vmem:[#allocation6 + $0x18] sm:$0xff]
    %v208 = vld [vmem:[#allocation6 + $0x20] sm:$0xff]
    %v209 = vld [vmem:[#allocation6 + $0x28] sm:$0xff]
    %v210 = vld [vmem:[#allocation6 + $0x30] sm:$0xff]
    %v211 = vld [vmem:[#allocation6 + $0x38] sm:$0xff]
    %v212 = vpack.c.bf16 %v205, %v204
    %v213 = vpack.c.bf16 %v207, %v206
    %v214 = vpack.c.bf16 %v209, %v208
    %v215 = vpack.c.bf16 %v211, %v210
    %v216 = vld [vmem:[#allocation9] sm:$0xf]
    %v217 = vld [vmem:[#allocation9 + $0x4] sm:$0xf]
    %v218 = vld [vmem:[#allocation9 + $0x8] sm:$0xf]
    %v219 = vld [vmem:[#allocation9 + $0xc] sm:$0xf]
    %v220 = vld [vmem:[#allocation11] sm:$0x1]
    %v222 = vlaneseq
    %v223 = vshrl.u32 %v222, 7
    %v224 = vsub.s32 0, %v223
    %v225 = vrot.slane %v220, %v224
    %v231 = vunpack.c.l.b16 %v216
    %v232 = vunpack.c.l.b16 %v217
    %v233 = vunpack.c.l.b16 %v218
    %v234 = vunpack.c.l.b16 %v219
    %v235 = vpack.c.b16 %v232, %v231
    %v236 = vpack.c.b16 %v234, %v233
    %vm239 = vcmask 261120
    %v241 = vsel %vm239, %v212, 0
    %v244 = vsel %vm239, %v213, 0
    %v247 = vsel %vm239, %v214, 0
    %v250 = vsel %vm239, %v215, 0
    %252 = vmatprep.subr.bf16.mxu0 0
    %253 = vmatpush1.bf16.msra.mxu0 %v235
    %254 = vmatprep.subr.bf16.mxu0 0
    %255 = vmatpush1.bf16.msra.mxu0 %v236
    %256 = vmatprep.subr.bf16.mxu0 0
    %257 = vmatpush1.bf16.msra.mxu0 0
    %258 = vmatprep.subr.bf16.mxu0 0
    %259 = vmatpush1.bf16.msra.mxu0 0
    %260 = vmatprep.subr.bf16.mxu0 0
    %261 = vmatpush1.bf16.msra.mxu0 0
    %262 = vmatprep.subr.bf16.mxu0 0
    %263 = vmatpush1.bf16.msra.mxu0 0
    %264 = vmatprep.subr.bf16.mxu0 0
    %265 = vmatpush1.bf16.msra.mxu0 0
    %266 = vmatprep.subr.bf16.mxu0 0
    %267 = vmatpush1.bf16.msra.mxu0 0
    %268 = vmatprep.subr.bf16.mxu0 0
    %269 = vmatpush1.bf16.msra.mxu0 0
    %270 = vmatprep.subr.bf16.mxu0 0
    %271 = vmatpush1.bf16.msra.mxu0 0
    %272 = vmatprep.subr.bf16.mxu0 0
    %273 = vmatpush1.bf16.msra.mxu0 0
    %274 = vmatprep.subr.bf16.mxu0 0
    %275 = vmatpush1.bf16.msra.mxu0 0
    %276 = vmatprep.subr.bf16.mxu0 0
    %277 = vmatpush1.bf16.msra.mxu0 0
    %278 = vmatprep.subr.bf16.mxu0 0
    %279 = vmatpush1.bf16.msra.mxu0 0
    %280 = vmatprep.subr.bf16.mxu0 0
    %281 = vmatpush1.bf16.msra.mxu0 0
    %282 = vmatprep.subr.bf16.mxu0 0
    %283 = vmatpush1.bf16.msra.mxu0 0
    %284 = vmatprep.mubr.bf16.mxu0 0
    %285 = vmatmul.mubr.bf16.gmra.mrb[0].mxu0 %v241
    %v286 = vpop.f32.mrb[0].mxu0
    %v287 = vadd.f32 %v225, %v286
    %v288 = vpop.f32.mrb[0].mxu0
    %v289 = vpop.f32.mrb[0].mxu0
    %v290 = vadd.f32 %v225, %v289
    %v291 = vpop.f32.mrb[0].mxu0
    %292 = vmatprep.mubr.bf16.mxu0 0
    %293 = vmatmul.mubr.bf16.gmra.mrb[0].mxu0 %v244
    %v294 = vpop.f32.mrb[0].mxu0
    %v295 = vadd.f32 %v225, %v294
    %v296 = vpop.f32.mrb[0].mxu0
    %v297 = vpop.f32.mrb[0].mxu0
    %v298 = vadd.f32 %v225, %v297
    %v299 = vpop.f32.mrb[0].mxu0
    %300 = vmatprep.mubr.bf16.mxu0 0
    %301 = vmatmul.mubr.bf16.gmra.mrb[0].mxu0 %v247
    %v302 = vpop.f32.mrb[0].mxu0
    %v303 = vadd.f32 %v225, %v302
    %v304 = vpop.f32.mrb[0].mxu0
    %v305 = vpop.f32.mrb[0].mxu0
    %v306 = vadd.f32 %v225, %v305
    %v307 = vpop.f32.mrb[0].mxu0
    %308 = vmatprep.mubr.bf16.mxu0 0
    %309 = vmatmul.mubr.bf16.gmra.mrb[0].mxu0 %v250
    %v310 = vpop.f32.mrb[0].mxu0
    %v311 = vadd.f32 %v225, %v310
    %v312 = vpop.f32.mrb[0].mxu0
    %v313 = vpop.f32.mrb[0].mxu0
    %v314 = vadd.f32 %v225, %v313
    %v315 = vpop.f32.mrb[0].mxu0
    %316 = vdwg.mxu0
    %s317 = scalar_lea.vmem [#allocation3], 24
    %318 = vst.msk [vmem:[%s317] sm:$0xff] %vm239, %v287
    %319 = vst.msk [vmem:[%s317 + $0x8] sm:$0xff] %vm239, %v290
    %320 = vst.msk [vmem:[%s317 + $0x10] sm:$0xff] %vm239, %v295
    %321 = vst.msk [vmem:[%s317 + $0x18] sm:$0xff] %vm239, %v298
    %322 = vst.msk [vmem:[%s317 + $0x20] sm:$0xff] %vm239, %v303
    %323 = vst.msk [vmem:[%s317 + $0x28] sm:$0xff] %vm239, %v306
    %324 = vst.msk [vmem:[%s317 + $0x30] sm:$0xff] %vm239, %v311
    %325 = vst.msk [vmem:[%s317 + $0x38] sm:$0xff] %vm239, %v314
    %v326 = vld [vmem:[#allocation15 + $0x3] sm:$0x1]
    %v327 = vlaneseq
    %v328 = vshrl.u32 %v327, 7
    %v329 = vsub.s32 0, %v328
    %v330 = vrot.slane %v326, %v329
    %v331 = vmul.f32 %v287, %v330
    %v332 = vmul.f32 %v290, %v330
    %v333 = vmul.f32 %v295, %v330
    %v334 = vmul.f32 %v298, %v330
    %v335 = vmul.f32 %v303, %v330
    %v336 = vmul.f32 %v306, %v330
    %v337 = vmul.f32 %v311, %v330
    %v338 = vmul.f32 %v314, %v330
    %v339 = vld [vmem:[#allocation17] sm:$0x1]
    %v341 = vlaneseq
    %v342 = vshrl.u32 %v341, 7
    %v343 = vsub.s32 0, %v342
    %v344 = vrot.slane %v339, %v343
    %v346 = vadd.f32 %v331, %v344
    %v347 = vadd.f32 %v332, %v344
    %v348 = vadd.f32 %v333, %v344
    %v349 = vadd.f32 %v334, %v344
    %v350 = vadd.f32 %v335, %v344
    %v351 = vadd.f32 %v336, %v344
    %v352 = vadd.f32 %v337, %v344
    %v353 = vadd.f32 %v338, %v344
    %v354 = vld [vmem:[#allocation3] sm:$0xff]
    %v355 = vld [vmem:[#allocation3 + $0x8] sm:$0xff]
    %v356 = vld [vmem:[#allocation3 + $0x10] sm:$0xff]
    %v357 = vld [vmem:[#allocation3 + $0x18] sm:$0xff]
    %v358 = vld [vmem:[#allocation3 + $0x20] sm:$0xff]
    %v359 = vld [vmem:[#allocation3 + $0x28] sm:$0xff]
    %v360 = vld [vmem:[#allocation3 + $0x30] sm:$0xff]
    %v361 = vld [vmem:[#allocation3 + $0x38] sm:$0xff]
    %v362 = vld [vmem:[#allocation15] sm:$0x1]
    %v363 = vlaneseq
    %v364 = vshrl.u32 %v363, 7
    %v365 = vsub.s32 0, %v364
    %v366 = vrot.slane %v362, %v365
    %v367 = vmul.f32 %v354, %v366
    %v368 = vmul.f32 %v355, %v366
    %v369 = vmul.f32 %v356, %v366
    %v370 = vmul.f32 %v357, %v366
    %v371 = vmul.f32 %v358, %v366
    %v372 = vmul.f32 %v359, %v366
    %v373 = vmul.f32 %v360, %v366
    %v374 = vmul.f32 %v361, %v366
    %v375 = vadd.f32 %v346, %v367
    %v376 = vadd.f32 %v347, %v368
    %v377 = vadd.f32 %v348, %v369
    %v378 = vadd.f32 %v349, %v370
    %v379 = vadd.f32 %v350, %v371
    %v380 = vadd.f32 %v351, %v372
    %v381 = vadd.f32 %v352, %v373
    %v382 = vadd.f32 %v353, %v374
    %s383 = scalar_lea.vmem [#allocation3], 8
    %v384 = vld [vmem:[%s383] sm:$0xff]
    %v385 = vld [vmem:[%s383 + $0x8] sm:$0xff]
    %v386 = vld [vmem:[%s383 + $0x10] sm:$0xff]
    %v387 = vld [vmem:[%s383 + $0x18] sm:$0xff]
    %v388 = vld [vmem:[%s383 + $0x20] sm:$0xff]
    %v389 = vld [vmem:[%s383 + $0x28] sm:$0xff]
    %v390 = vld [vmem:[%s383 + $0x30] sm:$0xff]
    %v391 = vld [vmem:[%s383 + $0x38] sm:$0xff]
    %v392 = vld [vmem:[#allocation15 + $0x1] sm:$0x1]
    %v393 = vlaneseq
    %v394 = vshrl.u32 %v393, 7
    %v395 = vsub.s32 0, %v394
    %v396 = vrot.slane %v392, %v395
    %v397 = vmul.f32 %v384, %v396
    %v398 = vmul.f32 %v385, %v396
    %v399 = vmul.f32 %v386, %v396
    %v400 = vmul.f32 %v387, %v396
    %v401 = vmul.f32 %v388, %v396
    %v402 = vmul.f32 %v389, %v396
    %v403 = vmul.f32 %v390, %v396
    %v404 = vmul.f32 %v391, %v396
    %v405 = vadd.f32 %v375, %v397
    %v406 = vadd.f32 %v376, %v398
    %v407 = vadd.f32 %v377, %v399
    %v408 = vadd.f32 %v378, %v400
    %v409 = vadd.f32 %v379, %v401
    %v410 = vadd.f32 %v380, %v402
    %v411 = vadd.f32 %v381, %v403
    %v412 = vadd.f32 %v382, %v404
    %s413 = scalar_lea.vmem [#allocation3], 16
    %v414 = vld [vmem:[%s413] sm:$0xff]
    %v415 = vld [vmem:[%s413 + $0x8] sm:$0xff]
    %v416 = vld [vmem:[%s413 + $0x10] sm:$0xff]
    %v417 = vld [vmem:[%s413 + $0x18] sm:$0xff]
    %v418 = vld [vmem:[%s413 + $0x20] sm:$0xff]
    %v419 = vld [vmem:[%s413 + $0x28] sm:$0xff]
    %v420 = vld [vmem:[%s413 + $0x30] sm:$0xff]
    %v421 = vld [vmem:[%s413 + $0x38] sm:$0xff]
    %v422 = vld [vmem:[#allocation15 + $0x2] sm:$0x1]
    %v423 = vlaneseq
    %v424 = vshrl.u32 %v423, 7
    %v425 = vsub.s32 0, %v424
    %v426 = vrot.slane %v422, %v425
    %v427 = vmul.f32 %v414, %v426
    %v428 = vmul.f32 %v415, %v426
    %v429 = vmul.f32 %v416, %v426
    %v430 = vmul.f32 %v417, %v426
    %v431 = vmul.f32 %v418, %v426
    %v432 = vmul.f32 %v419, %v426
    %v433 = vmul.f32 %v420, %v426
    %v434 = vmul.f32 %v421, %v426
    %v435 = vadd.f32 %v405, %v427
    %v436 = vadd.f32 %v406, %v428
    %v437 = vadd.f32 %v407, %v429
    %v438 = vadd.f32 %v408, %v430
    %v439 = vadd.f32 %v409, %v431
    %v440 = vadd.f32 %v410, %v432
    %v441 = vadd.f32 %v411, %v433
    %v442 = vadd.f32 %v412, %v434
    %v443 = vpack.c.bf16 %v436, %v435
    %v444 = vpack.c.bf16 %v438, %v437
    %v445 = vpack.c.bf16 %v440, %v439
    %v446 = vpack.c.bf16 %v442, %v441
    %v447 = vld [vmem:[#allocation18] sm:$0xff]
    %v448 = vld [vmem:[#allocation18 + $0x8] sm:$0xff]
    %v449 = vld [vmem:[#allocation18 + $0x10] sm:$0xff]
    %v450 = vld [vmem:[#allocation18 + $0x18] sm:$0xff]
    %v451 = vld [vmem:[#allocation20] sm:$0x3]
    %v453 = vlaneseq
    %v454 = vshrl.u32 %v453, 7
    %v455 = vsub.s32 0, %v454
    %v456 = vrot.slane %v451, %v455
    %v457 = vlaneseq
    %v458 = vshrl.u32 %v457, 7
    %v459 = vsub.s32 1, %v458
    %v460 = vrot.slane %v451, %v459
    %v467 = vunpack.c.l.b16 %v447
    %v468 = vunpack.c.h.b16 %v447
    %v469 = vunpack.c.l.b16 %v448
    %v470 = vunpack.c.h.b16 %v448
    %v471 = vunpack.c.l.b16 %v449
    %v472 = vunpack.c.h.b16 %v449
    %v473 = vunpack.c.l.b16 %v450
    %v474 = vunpack.c.h.b16 %v450
    %v475 = vpack.c.b16 %v469, %v467
    %v476 = vpack.c.b16 %v470, %v468
    %v477 = vpack.c.b16 %v473, %v471
    %v478 = vpack.c.b16 %v474, %v472
    %v484 = vsel %vm239, %v443, 0
    %v487 = vsel %vm239, %v444, 0
    %v490 = vsel %vm239, %v445, 0
    %v493 = vsel %vm239, %v446, 0
    %495 = vmatprep.subr.bf16.mxu0 %v476
    %496 = vmatpush1.bf16.msra.mxu0 %v475
    %497 = vmatprep.subr.bf16.mxu0 %v478
    %498 = vmatpush1.bf16.msra.mxu0 %v477
    %499 = vmatprep.subr.bf16.mxu0 0
    %500 = vmatpush1.bf16.msra.mxu0 0
    %501 = vmatprep.subr.bf16.mxu0 0
    %502 = vmatpush1.bf16.msra.mxu0 0
    %503 = vmatprep.subr.bf16.mxu0 0
    %504 = vmatpush1.bf16.msra.mxu0 0
    %505 = vmatprep.subr.bf16.mxu0 0
    %506 = vmatpush1.bf16.msra.mxu0 0
    %507 = vmatprep.subr.bf16.mxu0 0
    %508 = vmatpush1.bf16.msra.mxu0 0
    %509 = vmatprep.subr.bf16.mxu0 0
    %510 = vmatpush1.bf16.msra.mxu0 0
    %511 = vmatprep.subr.bf16.mxu0 0
    %512 = vmatpush1.bf16.msra.mxu0 0
    %513 = vmatprep.subr.bf16.mxu0 0
    %514 = vmatpush1.bf16.msra.mxu0 0
    %515 = vmatprep.subr.bf16.mxu0 0
    %516 = vmatpush1.bf16.msra.mxu0 0
    %517 = vmatprep.subr.bf16.mxu0 0
    %518 = vmatpush1.bf16.msra.mxu0 0
    %519 = vmatprep.subr.bf16.mxu0 0
    %520 = vmatpush1.bf16.msra.mxu0 0
    %521 = vmatprep.subr.bf16.mxu0 0
    %522 = vmatpush1.bf16.msra.mxu0 0
    %523 = vmatprep.subr.bf16.mxu0 0
    %524 = vmatpush1.bf16.msra.mxu0 0
    %525 = vmatprep.subr.bf16.mxu0 0
    %526 = vmatpush1.bf16.msra.mxu0 0
    %527 = vmatprep.mubr.bf16.mxu0 0
    %528 = vmatmul.mubr.bf16.gmra.mrb[0].mxu0 %v484
    %v529 = vpop.f32.mrb[0].mxu0
    %v530 = vadd.f32 %v456, %v529
    %v531 = vpop.f32.mrb[0].mxu0
    %v532 = vadd.f32 %v460, %v531
    %v533 = vpop.f32.mrb[0].mxu0
    %v534 = vadd.f32 %v456, %v533
    %v535 = vpop.f32.mrb[0].mxu0
    %v536 = vadd.f32 %v460, %v535
    %537 = vmatprep.mubr.bf16.mxu0 0
    %538 = vmatmul.mubr.bf16.gmra.mrb[0].mxu0 %v487
    %v539 = vpop.f32.mrb[0].mxu0
    %v540 = vadd.f32 %v456, %v539
    %v541 = vpop.f32.mrb[0].mxu0
    %v542 = vadd.f32 %v460, %v541
    %v543 = vpop.f32.mrb[0].mxu0
    %v544 = vadd.f32 %v456, %v543
    %v545 = vpop.f32.mrb[0].mxu0
    %v546 = vadd.f32 %v460, %v545
    %547 = vmatprep.mubr.bf16.mxu0 0
    %548 = vmatmul.mubr.bf16.gmra.mrb[0].mxu0 %v490
    %v549 = vpop.f32.mrb[0].mxu0
    %v550 = vadd.f32 %v456, %v549
    %v551 = vpop.f32.mrb[0].mxu0
    %v552 = vadd.f32 %v460, %v551
    %v553 = vpop.f32.mrb[0].mxu0
    %v554 = vadd.f32 %v456, %v553
    %v555 = vpop.f32.mrb[0].mxu0
    %v556 = vadd.f32 %v460, %v555
    %557 = vmatprep.mubr.bf16.mxu0 0
    %558 = vmatmul.mubr.bf16.gmra.mrb[0].mxu0 %v493
    %v559 = vpop.f32.mrb[0].mxu0
    %v560 = vadd.f32 %v456, %v559
    %v561 = vpop.f32.mrb[0].mxu0
    %v562 = vadd.f32 %v460, %v561
    %v563 = vpop.f32.mrb[0].mxu0
    %v564 = vadd.f32 %v456, %v563
    %v565 = vpop.f32.mrb[0].mxu0
    %v566 = vadd.f32 %v460, %v565
    %567 = vdwg.mxu0
    %v568 = vxor.u32 %v530, 2147483648
    %v569 = vxor.u32 %v534, 2147483648
    %v570 = vxor.u32 %v540, 2147483648
    %v571 = vxor.u32 %v544, 2147483648
    %v572 = vxor.u32 %v550, 2147483648
    %v573 = vxor.u32 %v554, 2147483648
    %v574 = vxor.u32 %v560, 2147483648
    %v575 = vxor.u32 %v564, 2147483648
    %v576 = vmul.f32 %v568, 1.442695
    %v577 = vpow.pop %v576
    %v578 = vmul.f32 %v569, 1.442695
    %v579 = vpow.pop %v578
    %v580 = vmul.f32 %v570, 1.442695
    %v581 = vpow.pop %v580
    %v582 = vmul.f32 %v571, 1.442695
    %v583 = vpow.pop %v582
    %v584 = vmul.f32 %v572, 1.442695
    %v585 = vpow.pop %v584
    %v586 = vmul.f32 %v573, 1.442695
    %v587 = vpow.pop %v586
    %v588 = vmul.f32 %v574, 1.442695
    %v589 = vpow.pop %v588
    %v590 = vmul.f32 %v575, 1.442695
    %v591 = vpow.pop %v590
    %v592 = vadd.f32 %v577, 1.0
    %v593 = vadd.f32 %v579, 1.0
    %v594 = vadd.f32 %v581, 1.0
    %v595 = vadd.f32 %v583, 1.0
    %v596 = vadd.f32 %v585, 1.0
    %v597 = vadd.f32 %v587, 1.0
    %v598 = vadd.f32 %v589, 1.0
    %v599 = vadd.f32 %v591, 1.0
    %v600 = vrcp.pop %v592
    %v601 = vmul.f32 1.0, %v600
    %v602 = vrcp.pop %v593
    %v603 = vmul.f32 1.0, %v602
    %v604 = vrcp.pop %v594
    %v605 = vmul.f32 1.0, %v604
    %v606 = vrcp.pop %v595
    %v607 = vmul.f32 1.0, %v606
    %v608 = vrcp.pop %v596
    %v609 = vmul.f32 1.0, %v608
    %v610 = vrcp.pop %v597
    %v611 = vmul.f32 1.0, %v610
    %v612 = vrcp.pop %v598
    %v613 = vmul.f32 1.0, %v612
    %v614 = vrcp.pop %v599
    %v615 = vmul.f32 1.0, %v614
    %v616 = vxor.u32 %v532, 2147483648
    %v617 = vxor.u32 %v536, 2147483648
    %v618 = vxor.u32 %v542, 2147483648
    %v619 = vxor.u32 %v546, 2147483648
    %v620 = vxor.u32 %v552, 2147483648
    %v621 = vxor.u32 %v556, 2147483648
    %v622 = vxor.u32 %v562, 2147483648
    %v623 = vxor.u32 %v566, 2147483648
    %v624 = vmul.f32 %v616, 1.442695
    %v625 = vpow.pop %v624
    %v626 = vmul.f32 %v617, 1.442695
    %v627 = vpow.pop %v626
    %v628 = vmul.f32 %v618, 1.442695
    %v629 = vpow.pop %v628
    %v630 = vmul.f32 %v619, 1.442695
    %v631 = vpow.pop %v630
    %v632 = vmul.f32 %v620, 1.442695
    %v633 = vpow.pop %v632
    %v634 = vmul.f32 %v621, 1.442695
    %v635 = vpow.pop %v634
    %v636 = vmul.f32 %v622, 1.442695
    %v637 = vpow.pop %v636
    %v638 = vmul.f32 %v623, 1.442695
    %v639 = vpow.pop %v638
    %v640 = vadd.f32 %v625, 1.0
    %v641 = vadd.f32 %v627, 1.0
    %v642 = vadd.f32 %v629, 1.0
    %v643 = vadd.f32 %v631, 1.0
    %v644 = vadd.f32 %v633, 1.0
    %v645 = vadd.f32 %v635, 1.0
    %v646 = vadd.f32 %v637, 1.0
    %v647 = vadd.f32 %v639, 1.0
    %v648 = vrcp.pop %v640
    %v649 = vmul.f32 1.0, %v648
    %v650 = vrcp.pop %v641
    %v651 = vmul.f32 1.0, %v650
    %v652 = vrcp.pop %v642
    %v653 = vmul.f32 1.0, %v652
    %v654 = vrcp.pop %v643
    %v655 = vmul.f32 1.0, %v654
    %v656 = vrcp.pop %v644
    %v657 = vmul.f32 1.0, %v656
    %v658 = vrcp.pop %v645
    %v659 = vmul.f32 1.0, %v658
    %v660 = vrcp.pop %v646
    %v661 = vmul.f32 1.0, %v660
    %v662 = vrcp.pop %v647
    %v663 = vmul.f32 1.0, %v662
    %v664 = vmul.f32 %v649, -8.0
    %v665 = vmul.f32 %v651, -8.0
    %v666 = vmul.f32 %v653, -8.0
    %v667 = vmul.f32 %v655, -8.0
    %v668 = vmul.f32 %v657, -8.0
    %v669 = vmul.f32 %v659, -8.0
    %v670 = vmul.f32 %v661, -8.0
    %v671 = vmul.f32 %v663, -8.0
    %v672 = vld [vmem:[#allocation21] sm:$0x1]
    %v673 = vmax.f32 %v672, 0.0
    %vm674 = vcmp.ne.f32.partialorder %v672, %v672
    %v675 = vadd.f32 %v672, 0.0
    %v676 = vand.u32 2147483647, %v672
    %v677 = vsub.f32 0.0, %v676
    %v678 = vmul.f32 %v677, 1.442695
    %v679 = vpow.pop %v678
    %v680 = vadd.f32 %v679, 1.0
    %v681 = vlog2.pop %v680
    %v682 = vmul.f32 %v681, 0.6931472
    %v683 = vmul.f32 -0.5, %v679
    %v684 = vadd.f32 %v683, 1.0
    %v685 = vmul.f32 %v684, %v679
    %v686 = vand.u32 2147483647, %v679
    %vm687 = vcmp.lt.f32.partialorder %v686, 0.0004427343
    %v688 = vsel %vm687, %v685, %v682
    %v689 = vadd.f32 %v673, %v688
    %v690 = vsel %vm674, %v675, %v689
    %v692 = vlaneseq
    %v693 = vshrl.u32 %v692, 7
    %v694 = vsub.s32 0, %v693
    %v695 = vrot.slane %v690, %v694
    %v697 = vmul.f32 %v664, %v695
    %v698 = vmul.f32 %v665, %v695
    %v699 = vmul.f32 %v666, %v695
    %v700 = vmul.f32 %v667, %v695
    %v701 = vmul.f32 %v668, %v695
    %v702 = vmul.f32 %v669, %v695
    %v703 = vmul.f32 %v670, %v695
    %v704 = vmul.f32 %v671, %v695
    %v705 = vmul.f32 %v697, 1.442695
    %v706 = vpow.pop %v705
    %v707 = vmul.f32 %v698, 1.442695
    %v708 = vpow.pop %v707
    %v709 = vmul.f32 %v699, 1.442695
    %v710 = vpow.pop %v709
    %v711 = vmul.f32 %v700, 1.442695
    %v712 = vpow.pop %v711
    %v713 = vmul.f32 %v701, 1.442695
    %v714 = vpow.pop %v713
    %v715 = vmul.f32 %v702, 1.442695
    %v716 = vpow.pop %v715
    %v717 = vmul.f32 %v703, 1.442695
    %v718 = vpow.pop %v717
    %v719 = vmul.f32 %v704, 1.442695
    %v720 = vpow.pop %v719
    %v721 = vmul.f32 %v706, %v706
    %v722 = vmul.f32 %v708, %v708
    %v723 = vmul.f32 %v710, %v710
    %v724 = vmul.f32 %v712, %v712
    %v725 = vmul.f32 %v714, %v714
    %v726 = vmul.f32 %v716, %v716
    %v727 = vmul.f32 %v718, %v718
    %v728 = vmul.f32 %v720, %v720
    %v729 = vsub.f32 1.0, %v721
    %v730 = vsub.f32 1.0, %v722
    %v731 = vsub.f32 1.0, %v723
    %v732 = vsub.f32 1.0, %v724
    %v733 = vsub.f32 1.0, %v725
    %v734 = vsub.f32 1.0, %v726
    %v735 = vsub.f32 1.0, %v727
    %v736 = vsub.f32 1.0, %v728
    %v737 = vmax.f32 %v729, 0.0
    %v738 = vmax.f32 %v730, 0.0
    %v739 = vmax.f32 %v731, 0.0
    %v740 = vmax.f32 %v732, 0.0
    %v741 = vmax.f32 %v733, 0.0
    %v742 = vmax.f32 %v734, 0.0
    %v743 = vmax.f32 %v735, 0.0
    %v744 = vmax.f32 %v736, 0.0
    %v745 = vrsqrt.pop %v737
    %v746 = vmul.f32 %v737, %v745
    %vm747 = vcmp.eq.f32.partialorder %v737, inf
    %v748 = vsel %vm747, %v737, %v746
    %vm749 = vcmp.eq.f32.partialorder %v737, 0.0
    %v750 = vand.u32 %v737, 2147483648
    %v751 = vsel %vm749, %v750, %v748
    %v752 = vrsqrt.pop %v738
    %v753 = vmul.f32 %v738, %v752
    %vm754 = vcmp.eq.f32.partialorder %v738, inf
    %v755 = vsel %vm754, %v738, %v753
    %vm756 = vcmp.eq.f32.partialorder %v738, 0.0
    %v757 = vand.u32 %v738, 2147483648
    %v758 = vsel %vm756, %v757, %v755
    %v759 = vrsqrt.pop %v739
    %v760 = vmul.f32 %v739, %v759
    %vm761 = vcmp.eq.f32.partialorder %v739, inf
    %v762 = vsel %vm761, %v739, %v760
    %vm763 = vcmp.eq.f32.partialorder %v739, 0.0
    %v764 = vand.u32 %v739, 2147483648
    %v765 = vsel %vm763, %v764, %v762
    %v766 = vrsqrt.pop %v740
    %v767 = vmul.f32 %v740, %v766
    %vm768 = vcmp.eq.f32.partialorder %v740, inf
    %v769 = vsel %vm768, %v740, %v767
    %vm770 = vcmp.eq.f32.partialorder %v740, 0.0
    %v771 = vand.u32 %v740, 2147483648
    %v772 = vsel %vm770, %v771, %v769
    %v773 = vrsqrt.pop %v741
    %v774 = vmul.f32 %v741, %v773
    %vm775 = vcmp.eq.f32.partialorder %v741, inf
    %v776 = vsel %vm775, %v741, %v774
    %vm777 = vcmp.eq.f32.partialorder %v741, 0.0
    %v778 = vand.u32 %v741, 2147483648
    %v779 = vsel %vm777, %v778, %v776
    %v780 = vrsqrt.pop %v742
    %v781 = vmul.f32 %v742, %v780
    %vm782 = vcmp.eq.f32.partialorder %v742, inf
    %v783 = vsel %vm782, %v742, %v781
    %vm784 = vcmp.eq.f32.partialorder %v742, 0.0
    %v785 = vand.u32 %v742, 2147483648
    %v786 = vsel %vm784, %v785, %v783
    %v787 = vrsqrt.pop %v743
    %v788 = vmul.f32 %v743, %v787
    %vm789 = vcmp.eq.f32.partialorder %v743, inf
    %v790 = vsel %vm789, %v743, %v788
    %vm791 = vcmp.eq.f32.partialorder %v743, 0.0
    %v792 = vand.u32 %v743, 2147483648
    %v793 = vsel %vm791, %v792, %v790
    %v794 = vrsqrt.pop %v744
    %v795 = vmul.f32 %v744, %v794
    %vm796 = vcmp.eq.f32.partialorder %v744, inf
    %v797 = vsel %vm796, %v744, %v795
    %vm798 = vcmp.eq.f32.partialorder %v744, 0.0
    %v799 = vand.u32 %v744, 2147483648
    %v800 = vsel %vm798, %v799, %v797
    %v801 = vmul.f32 %v435, %v601
    %v802 = vmul.f32 %v436, %v603
    %v803 = vmul.f32 %v437, %v605
    %v804 = vmul.f32 %v438, %v607
    %v805 = vmul.f32 %v439, %v609
    %v806 = vmul.f32 %v440, %v611
    %v807 = vmul.f32 %v441, %v613
    %v808 = vmul.f32 %v442, %v615
    %809 = vst.msk [vmem:[#allocation4] sm:$0xff] %vm239, %v706
    %810 = vst.msk [vmem:[#allocation4 + $0x8] sm:$0xff] %vm239, %v708
    %811 = vst.msk [vmem:[#allocation4 + $0x10] sm:$0xff] %vm239, %v710
    %812 = vst.msk [vmem:[#allocation4 + $0x18] sm:$0xff] %vm239, %v712
    %813 = vst.msk [vmem:[#allocation4 + $0x20] sm:$0xff] %vm239, %v714
    %814 = vst.msk [vmem:[#allocation4 + $0x28] sm:$0xff] %vm239, %v716
    %815 = vst.msk [vmem:[#allocation4 + $0x30] sm:$0xff] %vm239, %v718
    %816 = vst.msk [vmem:[#allocation4 + $0x38] sm:$0xff] %vm239, %v720
    %v817 = vmul.f32 %v801, %v751
    %v818 = vmul.f32 %v802, %v758
    %v819 = vmul.f32 %v803, %v765
    %v820 = vmul.f32 %v804, %v772
    %v821 = vmul.f32 %v805, %v779
    %v822 = vmul.f32 %v806, %v786
    %v823 = vmul.f32 %v807, %v793
    %v824 = vmul.f32 %v808, %v800
    %825 = vst.msk [vmem:[#allocation5] sm:$0xff] %vm239, %v817
    %826 = vst.msk [vmem:[#allocation5 + $0x8] sm:$0xff] %vm239, %v818
    %827 = vst.msk [vmem:[#allocation5 + $0x10] sm:$0xff] %vm239, %v819
    %828 = vst.msk [vmem:[#allocation5 + $0x18] sm:$0xff] %vm239, %v820
    %829 = vst.msk [vmem:[#allocation5 + $0x20] sm:$0xff] %vm239, %v821
    %830 = vst.msk [vmem:[#allocation5 + $0x28] sm:$0xff] %vm239, %v822
    %831 = vst.msk [vmem:[#allocation5 + $0x30] sm:$0xff] %vm239, %v823
    %832 = vst.msk [vmem:[#allocation5 + $0x38] sm:$0xff] %vm239, %v824
    // Predicated region
    $region102: #{griffin_recurrent_block.1} parent=1 // pred_check
      %p833 = pneg %p195
    $region103: #{griffin_recurrent_block.1} parent=1 // pred_check_branch
      %835 = sbr.rel (%p833) target = $region105
    $region104: #{griffin_recurrent_block.1} parent=1 // pred_region
      %836 = vst.msk [vmem:[#allocation4] sm:$0xff] %vm239, 0.0
      %837 = vst.msk [vmem:[#allocation5] sm:$0xff] %vm239, %v801
    $region105: #{griffin_recurrent_block.1} parent=1 // pred_fallthru
      _
    %v838 = vld [vmem:[#allocation2] sm:$0xff]
    %v839 = vld [vmem:[#allocation4] sm:$0xff]
    %v840 = vmul.f32 %v839, %v838
    %v841 = vld [vmem:[#allocation5] sm:$0xff]
    %v842 = vadd.f32 %v840, %v841
    %843 = vst.msk [vmem:[#allocation27] sm:$0xff] %vm239, %v842
    %s844 = scalar_lea.vmem [#allocation4], 8
    %v845 = vld [vmem:[%s844] sm:$0xff]
    %v846 = vmul.f32 %v845, %v842
    %s847 = scalar_lea.vmem [#allocation5], 8
    %v848 = vld [vmem:[%s847] sm:$0xff]
    %v849 = vadd.f32 %v846, %v848
    %s850 = scalar_lea.vmem [#allocation27], 8
    %851 = vst.msk [vmem:[%s850] sm:$0xff] %vm239, %v849
    %s852 = scalar_lea.vmem [#allocation4], 16
    %v853 = vld [vmem:[%s852] sm:$0xff]
    %v854 = vmul.f32 %v853, %v849
    %s855 = scalar_lea.vmem [#allocation5], 16
    %v856 = vld [vmem:[%s855] sm:$0xff]
    %v857 = vadd.f32 %v854, %v856
    %s858 = scalar_lea.vmem [#allocation27], 16
    %859 = vst.msk [vmem:[%s858] sm:$0xff] %vm239, %v857
    %s860 = scalar_lea.vmem [#allocation4], 24
    %v861 = vld [vmem:[%s860] sm:$0xff]
    %v862 = vmul.f32 %v861, %v857
    %s863 = scalar_lea.vmem [#allocation5], 24
    %v864 = vld [vmem:[%s863] sm:$0xff]
    %v865 = vadd.f32 %v862, %v864
    %s866 = scalar_lea.vmem [#allocation27], 24
    %867 = vst.msk [vmem:[%s866] sm:$0xff] %vm239, %v865
    %s868 = scalar_lea.vmem [#allocation4], 32
    %v869 = vld [vmem:[%s868] sm:$0xff]
    %v870 = vmul.f32 %v869, %v865
    %s871 = scalar_lea.vmem [#allocation5], 32
    %v872 = vld [vmem:[%s871] sm:$0xff]
    %v873 = vadd.f32 %v870, %v872
    %s874 = scalar_lea.vmem [#allocation27], 32
    %875 = vst.msk [vmem:[%s874] sm:$0xff] %vm239, %v873
    %s876 = scalar_lea.vmem [#allocation4], 40
    %v877 = vld [vmem:[%s876] sm:$0xff]
    %v878 = vmul.f32 %v877, %v873
    %s879 = scalar_lea.vmem [#allocation5], 40
    %v880 = vld [vmem:[%s879] sm:$0xff]
    %v881 = vadd.f32 %v878, %v880
    %s882 = scalar_lea.vmem [#allocation27], 40
    %883 = vst.msk [vmem:[%s882] sm:$0xff] %vm239, %v881
    %s884 = scalar_lea.vmem [#allocation4], 48
    %v885 = vld [vmem:[%s884] sm:$0xff]
    %v886 = vmul.f32 %v885, %v881
    %s887 = scalar_lea.vmem [#allocation5], 48
    %v888 = vld [vmem:[%s887] sm:$0xff]
    %v889 = vadd.f32 %v886, %v888
    %s890 = scalar_lea.vmem [#allocation27], 48
    %891 = vst.msk [vmem:[%s890] sm:$0xff] %vm239, %v889
    %s892 = scalar_lea.vmem [#allocation4], 56
    %v893 = vld [vmem:[%s892] sm:$0xff]
    %v894 = vmul.f32 %v893, %v889
    %s895 = scalar_lea.vmem [#allocation5], 56
    %v896 = vld [vmem:[%s895] sm:$0xff]
    %v897 = vadd.f32 %v894, %v896
    %s898 = scalar_lea.vmem [#allocation27], 56
    %899 = vst.msk [vmem:[%s898] sm:$0xff] %vm239, %v897
    %900 = vst.msk [vmem:[#allocation2] sm:$0xff] %vm239, %v897
    %s901 = sadd.s32 0, 1
    %p902 = scmp.lt.s32.totalorder %s901, 1
    // Predicated region
    $region106: #{griffin_recurrent_block.1} parent=1 // pred_check
      %p903 = pneg %p902
    $region107: #{griffin_recurrent_block.1} parent=1 // pred_check_branch
      %905 = sbr.rel (%p903) target = $region109
    $region108: #{griffin_recurrent_block.1} parent=1 // pred_region
      %s906 = scalar_lea.vmem [#allocation3], 64
      %v907 = vld [vmem:[%s906] sm:$0xff]
      %v908 = vld [vmem:[%s906 + $0x8] sm:$0xff]
      %v909 = vld [vmem:[%s906 + $0x10] sm:$0xff]
      %910 = vst.msk [vmem:[#allocation3] sm:$0xff] %vm239, %v907
      %911 = vst.msk [vmem:[#allocation3 + $0x8] sm:$0xff] %vm239, %v908
      %912 = vst.msk [vmem:[#allocation3 + $0x10] sm:$0xff] %vm239, %v909
    $region109: #{griffin_recurrent_block.1} parent=1 // pred_fallthru
      _
    %v913 = vld [vmem:[#allocation12] sm:$0xf]
    %v914 = vld [vmem:[#allocation12 + $0x4] sm:$0xf]
    %v915 = vld [vmem:[#allocation12 + $0x8] sm:$0xf]
    %v916 = vld [vmem:[#allocation12 + $0xc] sm:$0xf]
    %v917 = vld [vmem:[#allocation14] sm:$0x1]
    %v919 = vlaneseq
    %v920 = vshrl.u32 %v919, 7
    %v921 = vsub.s32 0, %v920
    %v922 = vrot.slane %v917, %v921
    %v928 = vunpack.c.l.b16 %v913
    %v929 = vunpack.c.l.b16 %v914
    %v930 = vunpack.c.l.b16 %v915
    %v931 = vunpack.c.l.b16 %v916
    %v932 = vpack.c.b16 %v929, %v928
    %v933 = vpack.c.b16 %v931, %v930
    %936 = vmatprep.subr.bf16.mxu0 0
    %937 = vmatpush1.bf16.msra.mxu0 %v932
    %938 = vmatprep.subr.bf16.mxu0 0
    %939 = vmatpush1.bf16.msra.mxu0 %v933
    %940 = vmatprep.subr.bf16.mxu0 0
    %941 = vmatpush1.bf16.msra.mxu0 0
    %942 = vmatprep.subr.bf16.mxu0 0
    %943 = vmatpush1.bf16.msra.mxu0 0
    %944 = vmatprep.subr.bf16.mxu0 0
    %945 = vmatpush1.bf16.msra.mxu0 0
    %946 = vmatprep.subr.bf16.mxu0 0
    %947 = vmatpush1.bf16.msra.mxu0 0
    %948 = vmatprep.subr.bf16.mxu0 0
    %949 = vmatpush1.bf16.msra.mxu0 0
    %950 = vmatprep.subr.bf16.mxu0 0
    %951 = vmatpush1.bf16.msra.mxu0 0
    %952 = vmatprep.subr.bf16.mxu0 0
    %953 = vmatpush1.bf16.msra.mxu0 0
    %954 = vmatprep.subr.bf16.mxu0 0
    %955 = vmatpush1.bf16.msra.mxu0 0
    %956 = vmatprep.subr.bf16.mxu0 0
    %957 = vmatpush1.bf16.msra.mxu0 0
    %958 = vmatprep.subr.bf16.mxu0 0
    %959 = vmatpush1.bf16.msra.mxu0 0
    %960 = vmatprep.subr.bf16.mxu0 0
    %961 = vmatpush1.bf16.msra.mxu0 0
    %962 = vmatprep.subr.bf16.mxu0 0
    %963 = vmatpush1.bf16.msra.mxu0 0
    %964 = vmatprep.subr.bf16.mxu0 0
    %965 = vmatpush1.bf16.msra.mxu0 0
    %966 = vmatprep.subr.bf16.mxu0 0
    %967 = vmatpush1.bf16.msra.mxu0 0
    %968 = vmatprep.mubr.bf16.mxu0 0
    %969 = vmatmul.mubr.bf16.gmra.mrb[0].mxu0 %v241
    %v970 = vpop.f32.mrb[0].mxu0
    %v971 = vadd.f32 %v922, %v970
    %v972 = vpop.f32.mrb[0].mxu0
    %v973 = vpop.f32.mrb[0].mxu0
    %v974 = vadd.f32 %v922, %v973
    %v975 = vpop.f32.mrb[0].mxu0
    %976 = vmatprep.mubr.bf16.mxu0 0
    %977 = vmatmul.mubr.bf16.gmra.mrb[0].mxu0 %v244
    %v978 = vpop.f32.mrb[0].mxu0
    %v979 = vadd.f32 %v922, %v978
    %v980 = vpop.f32.mrb[0].mxu0
    %v981 = vpop.f32.mrb[0].mxu0
    %v982 = vadd.f32 %v922, %v981
    %v983 = vpop.f32.mrb[0].mxu0
    %984 = vmatprep.mubr.bf16.mxu0 0
    %985 = vmatmul.mubr.bf16.gmra.mrb[0].mxu0 %v247
    %v986 = vpop.f32.mrb[0].mxu0
    %v987 = vadd.f32 %v922, %v986
    %v988 = vpop.f32.mrb[0].mxu0
    %v989 = vpop.f32.mrb[0].mxu0
    %v990 = vadd.f32 %v922, %v989
    %v991 = vpop.f32.mrb[0].mxu0
    %992 = vmatprep.mubr.bf16.mxu0 0
    %993 = vmatmul.mubr.bf16.gmra.mrb[0].mxu0 %v250
    %v994 = vpop.f32.mrb[0].mxu0
    %v995 = vadd.f32 %v922, %v994
    %v996 = vpop.f32.mrb[0].mxu0
    %v997 = vpop.f32.mrb[0].mxu0
    %v998 = vadd.f32 %v922, %v997
    %v999 = vpop.f32.mrb[0].mxu0
    %1000 = vdwg.mxu0
    %v1001 = vmul.f32 %v971, 0.5
    %v1002 = vmul.f32 %v974, 0.5
    %v1003 = vmul.f32 %v979, 0.5
    %v1004 = vmul.f32 %v982, 0.5
    %v1005 = vmul.f32 %v987, 0.5
    %v1006 = vmul.f32 %v990, 0.5
    %v1007 = vmul.f32 %v995, 0.5
    %v1008 = vmul.f32 %v998, 0.5
    %v1009 = vmul.f32 %v971, 0.044715
    %v1010 = vmul.f32 %v974, 0.044715
    %v1011 = vmul.f32 %v979, 0.044715
    %v1012 = vmul.f32 %v982, 0.044715
    %v1013 = vmul.f32 %v987, 0.044715
    %v1014 = vmul.f32 %v990, 0.044715
    %v1015 = vmul.f32 %v995, 0.044715
    %v1016 = vmul.f32 %v998, 0.044715
    %v1017 = vmul.f32 %v1009, %v971
    %v1018 = vmul.f32 %v1010, %v974
    %v1019 = vmul.f32 %v1011, %v979
    %v1020 = vmul.f32 %v1012, %v982
    %v1021 = vmul.f32 %v1013, %v987
    %v1022 = vmul.f32 %v1014, %v990
    %v1023 = vmul.f32 %v1015, %v995
    %v1024 = vmul.f32 %v1016, %v998
    %v1025 = vmul.f32 %v1017, %v971
    %v1026 = vmul.f32 %v1018, %v974
    %v1027 = vmul.f32 %v1019, %v979
    %v1028 = vmul.f32 %v1020, %v982
    %v1029 = vmul.f32 %v1021, %v987
    %v1030 = vmul.f32 %v1022, %v990
    %v1031 = vmul.f32 %v1023, %v995
    %v1032 = vmul.f32 %v1024, %v998
    %v1033 = vadd.f32 %v971, %v1025
    %v1034 = vadd.f32 %v974, %v1026
    %v1035 = vadd.f32 %v979, %v1027
    %v1036 = vadd.f32 %v982, %v1028
    %v1037 = vadd.f32 %v987, %v1029
    %v1038 = vadd.f32 %v990, %v1030
    %v1039 = vadd.f32 %v995, %v1031
    %v1040 = vadd.f32 %v998, %v1032
    %v1041 = vmul.f32 %v1033, 0.7978846
    %v1042 = vmul.f32 %v1034, 0.7978846
    %v1043 = vmul.f32 %v1035, 0.7978846
    %v1044 = vmul.f32 %v1036, 0.7978846
    %v1045 = vmul.f32 %v1037, 0.7978846
    %v1046 = vmul.f32 %v1038, 0.7978846
    %v1047 = vmul.f32 %v1039, 0.7978846
    %v1048 = vmul.f32 %v1040, 0.7978846
    %v1049 = vtanh.pop %v1041
    %v1050 = vtanh.pop %v1042
    %v1051 = vtanh.pop %v1043
    %v1052 = vtanh.pop %v1044
    %v1053 = vtanh.pop %v1045
    %v1054 = vtanh.pop %v1046
    %v1055 = vtanh.pop %v1047
    %v1056 = vtanh.pop %v1048
    %v1057 = vadd.f32 %v1049, 1.0
    %v1058 = vadd.f32 %v1050, 1.0
    %v1059 = vadd.f32 %v1051, 1.0
    %v1060 = vadd.f32 %v1052, 1.0
    %v1061 = vadd.f32 %v1053, 1.0
    %v1062 = vadd.f32 %v1054, 1.0
    %v1063 = vadd.f32 %v1055, 1.0
    %v1064 = vadd.f32 %v1056, 1.0
    %v1065 = vmul.f32 %v1001, %v1057
    %v1066 = vmul.f32 %v1002, %v1058
    %v1067 = vmul.f32 %v1003, %v1059
    %v1068 = vmul.f32 %v1004, %v1060
    %v1069 = vmul.f32 %v1005, %v1061
    %v1070 = vmul.f32 %v1006, %v1062
    %v1071 = vmul.f32 %v1007, %v1063
    %v1072 = vmul.f32 %v1008, %v1064
    %v1073 = vld [vmem:[#allocation27] sm:$0xff]
    %v1074 = vld [vmem:[#allocation27 + $0x8] sm:$0xff]
    %v1075 = vld [vmem:[#allocation27 + $0x10] sm:$0xff]
    %v1076 = vld [vmem:[#allocation27 + $0x18] sm:$0xff]
    %v1077 = vld [vmem:[#allocation27 + $0x20] sm:$0xff]
    %v1078 = vld [vmem:[#allocation27 + $0x28] sm:$0xff]
    %v1079 = vld [vmem:[#allocation27 + $0x30] sm:$0xff]
    %v1080 = vld [vmem:[#allocation27 + $0x38] sm:$0xff]
    %v1081 = vmul.f32 %v1073, %v1065
    %v1082 = vmul.f32 %v1074, %v1066
    %v1083 = vmul.f32 %v1075, %v1067
    %v1084 = vmul.f32 %v1076, %v1068
    %v1085 = vmul.f32 %v1077, %v1069
    %v1086 = vmul.f32 %v1078, %v1070
    %v1087 = vmul.f32 %v1079, %v1071
    %v1088 = vmul.f32 %v1080, %v1072
    %v1089 = vpack.c.bf16 %v1082, %v1081
    %v1090 = vpack.c.bf16 %v1084, %v1083
    %v1091 = vpack.c.bf16 %v1086, %v1085
    %v1092 = vpack.c.bf16 %v1088, %v1087
    %v1093 = vld [vmem:[#allocation23] sm:$0xf]
    %v1094 = vld [vmem:[#allocation23 + $0x4] sm:$0xf]
    %v1095 = vld [vmem:[#allocation23 + $0x8] sm:$0xf]
    %v1096 = vld [vmem:[#allocation23 + $0xc] sm:$0xf]
    %v1097 = vld [vmem:[#allocation24] sm:$0x1]
    %v1099 = vlaneseq
    %v1100 = vshrl.u32 %v1099, 7
    %v1101 = vsub.s32 0, %v1100
    %v1102 = vrot.slane %v1097, %v1101
    %v1108 = vunpack.c.l.b16 %v1093
    %v1109 = vunpack.c.l.b16 %v1094
    %v1110 = vunpack.c.l.b16 %v1095
    %v1111 = vunpack.c.l.b16 %v1096
    %v1112 = vpack.c.b16 %v1109, %v1108
    %v1113 = vpack.c.b16 %v1111, %v1110
    %v1117 = vsel %vm239, %v1089, 0
    %v1120 = vsel %vm239, %v1090, 0
    %v1123 = vsel %vm239, %v1091, 0
    %v1126 = vsel %vm239, %v1092, 0
    %1128 = vmatprep.subr.bf16.mxu0 0
    %1129 = vmatpush1.bf16.msra.mxu0 %v1112
    %1130 = vmatprep.subr.bf16.mxu0 0
    %1131 = vmatpush1.bf16.msra.mxu0 %v1113
    %1132 = vmatprep.subr.bf16.mxu0 0
    %1133 = vmatpush1.bf16.msra.mxu0 0
    %1134 = vmatprep.subr.bf16.mxu0 0
    %1135 = vmatpush1.bf16.msra.mxu0 0
    %1136 = vmatprep.subr.bf16.mxu0 0
    %1137 = vmatpush1.bf16.msra.mxu0 0
    %1138 = vmatprep.subr.bf16.mxu0 0
    %1139 = vmatpush1.bf16.msra.mxu0 0
    %1140 = vmatprep.subr.bf16.mxu0 0
    %1141 = vmatpush1.bf16.msra.mxu0 0
    %1142 = vmatprep.subr.bf16.mxu0 0
    %1143 = vmatpush1.bf16.msra.mxu0 0
    %1144 = vmatprep.subr.bf16.mxu0 0
    %1145 = vmatpush1.bf16.msra.mxu0 0
    %1146 = vmatprep.subr.bf16.mxu0 0
    %1147 = vmatpush1.bf16.msra.mxu0 0
    %1148 = vmatprep.subr.bf16.mxu0 0
    %1149 = vmatpush1.bf16.msra.mxu0 0
    %1150 = vmatprep.subr.bf16.mxu0 0
    %1151 = vmatpush1.bf16.msra.mxu0 0
    %1152 = vmatprep.subr.bf16.mxu0 0
    %1153 = vmatpush1.bf16.msra.mxu0 0
    %1154 = vmatprep.subr.bf16.mxu0 0
    %1155 = vmatpush1.bf16.msra.mxu0 0
    %1156 = vmatprep.subr.bf16.mxu0 0
    %1157 = vmatpush1.bf16.msra.mxu0 0
    %1158 = vmatprep.subr.bf16.mxu0 0
    %1159 = vmatpush1.bf16.msra.mxu0 0
    %1160 = vmatprep.mubr.bf16.mxu0 0
    %1161 = vmatmul.mubr.bf16.gmra.mrb[0].mxu0 %v1117
    %v1162 = vpop.f32.mrb[0].mxu0
    %v1163 = vadd.f32 %v1102, %v1162
    %v1164 = vpop.f32.mrb[0].mxu0
    %v1165 = vpop.f32.mrb[0].mxu0
    %v1166 = vadd.f32 %v1102, %v1165
    %v1167 = vpop.f32.mrb[0].mxu0
    %1168 = vmatprep.mubr.bf16.mxu0 0
    %1169 = vmatmul.mubr.bf16.gmra.mrb[0].mxu0 %v1120
    %v1170 = vpop.f32.mrb[0].mxu0
    %v1171 = vadd.f32 %v1102, %v1170
    %v1172 = vpop.f32.mrb[0].mxu0
    %v1173 = vpop.f32.mrb[0].mxu0
    %v1174 = vadd.f32 %v1102, %v1173
    %v1175 = vpop.f32.mrb[0].mxu0
    %1176 = vmatprep.mubr.bf16.mxu0 0
    %1177 = vmatmul.mubr.bf16.gmra.mrb[0].mxu0 %v1123
    %v1178 = vpop.f32.mrb[0].mxu0
    %v1179 = vadd.f32 %v1102, %v1178
    %v1180 = vpop.f32.mrb[0].mxu0
    %v1181 = vpop.f32.mrb[0].mxu0
    %v1182 = vadd.f32 %v1102, %v1181
    %v1183 = vpop.f32.mrb[0].mxu0
    %1184 = vmatprep.mubr.bf16.mxu0 0
    %1185 = vmatmul.mubr.bf16.gmra.mrb[0].mxu0 %v1126
    %v1186 = vpop.f32.mrb[0].mxu0
    %v1187 = vadd.f32 %v1102, %v1186
    %v1188 = vpop.f32.mrb[0].mxu0
    %v1189 = vpop.f32.mrb[0].mxu0
    %v1190 = vadd.f32 %v1102, %v1189
    %v1191 = vpop.f32.mrb[0].mxu0
    %1192 = vdwg.mxu0
    %1193 = vst.msk [vmem:[#allocation26] sm:$0xff] %vm239, %v1163
    %1194 = vst.msk [vmem:[#allocation26 + $0x8] sm:$0xff] %vm239, %v1166
    %1195 = vst.msk [vmem:[#allocation26 + $0x10] sm:$0xff] %vm239, %v1171
    %1196 = vst.msk [vmem:[#allocation26 + $0x18] sm:$0xff] %vm239, %v1174
    %1197 = vst.msk [vmem:[#allocation26 + $0x20] sm:$0xff] %vm239, %v1179
    %1198 = vst.msk [vmem:[#allocation26 + $0x28] sm:$0xff] %vm239, %v1182
    %1199 = vst.msk [vmem:[#allocation26 + $0x30] sm:$0xff] %vm239, %v1187
    %1200 = vst.msk [vmem:[#allocation26 + $0x38] sm:$0xff] %vm239, %v1190
    // Predicated region
    $region110: #{griffin_recurrent_block.1} parent=1 // pred_check
      _
    $region111: #{griffin_recurrent_block.1} parent=1 // pred_check_branch
      %1202 = sbr.rel (0) target = $region113
    $region112: #{griffin_recurrent_block.1} parent=1 // pred_region
      %s1204 = ssub.s32 1024, 1024
      %1205 = vsyncadd [#allocation8], %s1204
      %s1206 = sshll.u32 [#allocation26], 4
      %s1207 = int_to_ptr.vmem [resolvable:$true] %s1206
      %1212 = dma.vmem_to_hbm [thread:$0]  %s1207, 1024, %s12, [#allocation8], 128, 128, 8
    $region113: #{griffin_recurrent_block.1} parent=1 // pred_fallthru
      _
    // Predicated region
    $region114: #{griffin_recurrent_block.1} parent=1 // pred_check
      _
    $region115: #{griffin_recurrent_block.1} parent=1 // pred_check_branch
      %1214 = sbr.rel (0) target = $region117
    $region116: #{griffin_recurrent_block.1} parent=1 // pred_region
      %s1216 = ssub.s32 1024, 1024
      %1217 = vsyncadd [#allocation28], %s1216
      %s1218 = sshll.u32 [#allocation27], 4
      %s1219 = int_to_ptr.vmem [resolvable:$true] %s1218
      %1224 = dma.vmem_to_hbm [thread:$0]  %s1219, 1024, %s13, [#allocation28], 128, 128, 8
    $region117: #{griffin_recurrent_block.1} parent=1 // pred_fallthru
      _
    // Predicated region
    $region118: #{griffin_recurrent_block.1} parent=1 // pred_check
      _
    $region119: #{griffin_recurrent_block.1} parent=1 // pred_check_branch
      %1226 = sbr.rel (0) target = $region121
    $region120: #{griffin_recurrent_block.1} parent=1 // pred_region
      %1227 = dma.done [#allocation8], 1024
    $region121: #{griffin_recurrent_block.1} parent=1 // pred_fallthru
      _
    // Predicated region
    $region122: #{griffin_recurrent_block.1} parent=1 // pred_check
      _
    $region123: #{griffin_recurrent_block.1} parent=1 // pred_check_branch
      %1229 = sbr.rel (0) target = $region125
    $region124: #{griffin_recurrent_block.1} parent=1 // pred_region
      %1230 = dma.done [#allocation28], 1024
    $region125: #{griffin_recurrent_block.1} parent=1 // pred_fallthru
      _
    %1231 = vsyncpa [#allocation7], 1
    %1232 = vsyncpa [#allocation10], 1
    %1233 = vsyncpa [#allocation13], 1
    %1234 = vsyncpa [#allocation16], 1
    %1235 = vsyncpa [#allocation19], 1
    %1236 = vsyncpa [#allocation22], 1
    %1237 = vsyncpa [#allocation25], 1
    %1238 = vsyncpa [#allocation8], 1
    %1239 = vsyncpa [#allocation28], 1

</llo_original>
